<compile_context>
chip_gen: v7x
topology: tpu7x:2x2x1
jax: 0.10.0
libtpu: 0.0.40
codegen_flags: <defaults>
</compile_context>

<pallas_src>
import functools

import jax
import jax.numpy as jnp
from jax.experimental import pallas as pl
from jax.experimental.pallas import tpu as pltpu


def gru_prop_kernel(A_ref, states_ref, h_ref, wih_ref, whh_ref, bias_ref,
                    out_ref, *, n_node, state_dim, n_edge_types, batch_block):
    N, D, E, Bt = n_node, state_dim, n_edge_types, batch_block
    M = Bt * N

    h = h_ref[...]                                              # (M, D)

    # --- message passing: flow_t[b] = A[b, t] @ states[t, b]  (reused by all 3 gates)
    flows = []
    for t in range(E):
        f = jnp.einsum('bij,bjd->bid', A_ref[:, t], states_ref[t],
                       preferred_element_type=jnp.float32)      # (Bt, N, D)
        flows.append(f.reshape(M, D))                           # leading-dim merge only

    # --- GRUCell (PyTorch semantics), gate order g = 0:r, 1:z, 2:n
    def gate_i(g):
        acc = jnp.dot(flows[0], wih_ref[g, 0], preferred_element_type=jnp.float32)
        for t in range(1, E):
            acc = acc + jnp.dot(flows[t], wih_ref[g, t],
                                preferred_element_type=jnp.float32)
        return acc                                              # (M, D)

    def gate_h(g):
        return jnp.dot(h, whh_ref[g], preferred_element_type=jnp.float32)

    r = jax.nn.sigmoid(gate_i(0) + gate_h(0) + bias_ref[0])     # b_ih_r + b_hh_r (folded)
    z = jax.nn.sigmoid(gate_i(1) + gate_h(1) + bias_ref[1])     # b_ih_z + b_hh_z (folded)
    n = jnp.tanh(gate_i(2) + bias_ref[2] + r * (gate_h(2) + bias_ref[3]))

    out_ref[...] = (1.0 - z) * n + z * h


def gru_prop(states, state_cur, A, weight_ih, weight_hh, bias_ih, bias_hh,
             *, max_batch_block=8):
    E, B, N, D = states.shape

    # Adjacency slabs -> (B, E, N, N): edge type becomes a free leading-axis index.
    A4 = A.reshape(B, N, E, N).transpose(0, 2, 1, 3)

    # Per-gate, per-edge-type weight slabs laid out for right-multiplication:
    #   Wih[g, t, i, o] = weight_ih[g*D + o, t*D + i]
    #   Whh[g, i, o]    = weight_hh[g*D + o, i]
    Wih = weight_ih.reshape(3, D, E, D).transpose(0, 2, 3, 1)   # (3, E, D, D)
    Whh = weight_hh.reshape(3, D, D).transpose(0, 2, 1)         # (3, D, D)

    bih = bias_ih.reshape(3, 1, D)
    bhh = bias_hh.reshape(3, 1, D)
    bias = jnp.concatenate(
        [bih[0:1] + bhh[0:1],      # r
         bih[1:2] + bhh[1:2],      # z
         bih[2:3],                 # i_n
         bhh[2:3]], axis=0)        # h_n (scaled by r)          # (4, 1, D)

    h_flat = state_cur.reshape(B * N, D)

    # Batch blocking: fewer, fatter grid steps (bt must divide B).
    bt = min(B, max_batch_block)
    while B % bt:
        bt -= 1
    nb = B // bt

    kernel = functools.partial(gru_prop_kernel, n_node=N, state_dim=D,
                               n_edge_types=E, batch_block=bt)

    out_flat = pl.pallas_call(
        kernel,
        out_shape=jax.ShapeDtypeStruct((B * N, D), jnp.float32),
        grid=(nb,),
        in_specs=[
            pl.BlockSpec((bt, E, N, N), lambda b: (b, 0, 0, 0)),   # A4
            pl.BlockSpec((E, bt, N, D), lambda b: (0, b, 0, 0)),   # states
            pl.BlockSpec((bt * N, D), lambda b: (b, 0)),           # h (flat)
            pl.BlockSpec((3, E, D, D), lambda b: (0, 0, 0, 0)),    # W_ih slabs
            pl.BlockSpec((3, D, D), lambda b: (0, 0, 0)),          # W_hh slabs
            pl.BlockSpec((4, 1, D), lambda b: (0, 0, 0)),          # folded biases
        ],
        out_specs=pl.BlockSpec((bt * N, D), lambda b: (b, 0)),
        compiler_params=pltpu.CompilerParams(
            dimension_semantics=("parallel",)),
    )(A4, states, h_flat, Wih, Whh, bias)

    return out_flat.reshape(B, N, D)


def gru_prop_ref(states, state_cur, A, weight_ih, weight_hh, bias_ih, bias_hh):
    """Pure-JAX reference matching the PyTorch forward exactly."""
    E, B, N, D = states.shape
    flows = [jnp.einsum('bij,bjd->bid', A[:, :, t * N:(t + 1) * N], states[t])
             for t in range(E)]
    a = jnp.concatenate(flows, axis=-1).reshape(B * N, E * D)
    h = state_cur.reshape(B * N, D)
    gi = a @ weight_ih.T + bias_ih
    gh = h @ weight_hh.T + bias_hh
    i_r, i_z, i_n = gi[:, :D], gi[:, D:2 * D], gi[:, 2 * D:]
    h_r, h_z, h_n = gh[:, :D], gh[:, D:2 * D], gh[:, 2 * D:]
    r = jax.nn.sigmoid(i_r + h_r)
    z = jax.nn.sigmoid(i_z + h_z)
    n = jnp.tanh(i_n + r * h_n)
    out = (1.0 - z) * n + z * h
    return out.reshape(B, N, D)


if __name__ == "__main__":
    # Small shapes consistent with the module's forward.
    B, N, D, E = 2, 8, 32, 3   # batch, n_node, state_dim, n_edge_types

    key = jax.random.PRNGKey(0)
    k_A, k_s, k_h, k_wih, k_whh, k_bih, k_bhh = jax.random.split(key, 7)

    A = jax.random.normal(k_A, (B, N, E * N), dtype=jnp.float32)
    states = jax.random.normal(k_s, (E, B, N, D), dtype=jnp.float32)
    state_cur = jax.random.normal(k_h, (B, N, D), dtype=jnp.float32)

    # Deterministic GRUCell parameters in PyTorch layout (uniform +-1/sqrt(hidden)).
    bound = 1.0 / float(D) ** 0.5
    weight_ih = jax.random.uniform(k_wih, (3 * D, E * D), jnp.float32, -bound, bound)
    weight_hh = jax.random.uniform(k_whh, (3 * D, D), jnp.float32, -bound, bound)
    bias_ih = jax.random.uniform(k_bih, (3 * D,), jnp.float32, -bound, bound)
    bias_hh = jax.random.uniform(k_bhh, (3 * D,), jnp.float32, -bound, bound)

    out = gru_prop(states, state_cur, A, weight_ih, weight_hh, bias_ih, bias_hh)
    out = jax.block_until_ready(out)

    ref = gru_prop_ref(states, state_cur, A, weight_ih, weight_hh, bias_ih, bias_hh)
    assert out.shape == (B, N, D)
    assert jnp.allclose(out, ref, atol=2e-5, rtol=2e-5), "mismatch vs reference"

    print("KERNEL_OK")
</pallas_src>

<mosaic_0001>
module attributes {stable_mosaic.version = 11 : i64} {
  func.func @gru_prop_kernel(%arg0: i32, %arg1: memref<2x3x8x8xf32, #tpu.memory_space<vmem>>, %arg2: memref<3x2x8x32xf32, #tpu.memory_space<vmem>>, %arg3: memref<16x32xf32, #tpu.memory_space<vmem>>, %arg4: memref<3x3x32x32xf32, #tpu.memory_space<vmem>>, %arg5: memref<3x32x32xf32, #tpu.memory_space<vmem>>, %arg6: memref<4x1x32xf32, #tpu.memory_space<vmem>>, %arg7: memref<16x32xf32, #tpu.memory_space<vmem>>) attributes {dimension_semantics = [#tpu.dimension_semantics<parallel>], iteration_bounds = array<i64: 1>, scalar_prefetch = 0 : i64, scratch_operands = 0 : i64, tpu.core_type = #tpu.core_type<tc>, window_params = [{transform_indices = @transform_0, window_bounds = array<i64: 2, 3, 8, 8>}, {transform_indices = @transform_1, window_bounds = array<i64: 3, 2, 8, 32>}, {transform_indices = @transform_2, window_bounds = array<i64: 16, 32>}, {pipeline_mode = #tpu.pipeline_mode<synchronous>, transform_indices = @transform_3, window_bounds = array<i64: 3, 3, 32, 32>}, {pipeline_mode = #tpu.pipeline_mode<synchronous>, transform_indices = @transform_4, window_bounds = array<i64: 3, 32, 32>}, {pipeline_mode = #tpu.pipeline_mode<synchronous>, transform_indices = @transform_5, window_bounds = array<i64: 4, 1, 32>}, {transform_indices = @transform_6, window_bounds = array<i64: 16, 32>}]} {
    %c0 = arith.constant 0 : index
    %c0_0 = arith.constant 0 : index
    %0 = vector.load %arg3[%c0, %c0_0] : memref<16x32xf32, #tpu.memory_space<vmem>>, vector<16x32xf32>
    %c0_1 = arith.constant 0 : index
    %c0_2 = arith.constant 0 : index
    %c0_3 = arith.constant 0 : index
    %c0_4 = arith.constant 0 : index
    %1 = vector.load %arg1[%c0_1, %c0_2, %c0_3, %c0_4] : memref<2x3x8x8xf32, #tpu.memory_space<vmem>>, vector<2x1x8x8xf32>
    %2 = vector.shape_cast %1 : vector<2x1x8x8xf32> to vector<2x8x8xf32>
    %c0_5 = arith.constant 0 : index
    %c0_6 = arith.constant 0 : index
    %c0_7 = arith.constant 0 : index
    %c0_8 = arith.constant 0 : index
    %3 = vector.load %arg2[%c0_5, %c0_6, %c0_7, %c0_8] : memref<3x2x8x32xf32, #tpu.memory_space<vmem>>, vector<1x2x8x32xf32>
    %4 = vector.shape_cast %3 : vector<1x2x8x32xf32> to vector<2x8x32xf32>
    "tpu.trace_start"() <{level = 10 : i32, message = "bij,bjd->bid"}> : () -> ()
    %cst = arith.constant dense<0.000000e+00> : vector<2x8x32xf32>
    %5 = tpu.matmul %2, %4, %cst {dimension_numbers = #tpu.dot_dimension_numbers<[2], [1], [1], [2], [0, 0, 0, 1, 1, 2], [0], [0]>} : vector<2x8x8xf32>, vector<2x8x32xf32>, vector<2x8x32xf32> -> vector<2x8x32xf32>
    "tpu.trace_stop"() : () -> ()
    %6 = vector.shape_cast %5 : vector<2x8x32xf32> to vector<16x32xf32>
    %c0_9 = arith.constant 0 : index
    %c1 = arith.constant 1 : index
    %c0_10 = arith.constant 0 : index
    %c0_11 = arith.constant 0 : index
    %7 = vector.load %arg1[%c0_9, %c1, %c0_10, %c0_11] : memref<2x3x8x8xf32, #tpu.memory_space<vmem>>, vector<2x1x8x8xf32>
    %8 = vector.shape_cast %7 : vector<2x1x8x8xf32> to vector<2x8x8xf32>
    %c1_12 = arith.constant 1 : index
    %c0_13 = arith.constant 0 : index
    %c0_14 = arith.constant 0 : index
    %c0_15 = arith.constant 0 : index
    %9 = vector.load %arg2[%c1_12, %c0_13, %c0_14, %c0_15] : memref<3x2x8x32xf32, #tpu.memory_space<vmem>>, vector<1x2x8x32xf32>
    %10 = vector.shape_cast %9 : vector<1x2x8x32xf32> to vector<2x8x32xf32>
    "tpu.trace_start"() <{level = 10 : i32, message = "bij,bjd->bid"}> : () -> ()
    %cst_16 = arith.constant dense<0.000000e+00> : vector<2x8x32xf32>
    %11 = tpu.matmul %8, %10, %cst_16 {dimension_numbers = #tpu.dot_dimension_numbers<[2], [1], [1], [2], [0, 0, 0, 1, 1, 2], [0], [0]>} : vector<2x8x8xf32>, vector<2x8x32xf32>, vector<2x8x32xf32> -> vector<2x8x32xf32>
    "tpu.trace_stop"() : () -> ()
    %12 = vector.shape_cast %11 : vector<2x8x32xf32> to vector<16x32xf32>
    %c0_17 = arith.constant 0 : index
    %c2 = arith.constant 2 : index
    %c0_18 = arith.constant 0 : index
    %c0_19 = arith.constant 0 : index
    %13 = vector.load %arg1[%c0_17, %c2, %c0_18, %c0_19] : memref<2x3x8x8xf32, #tpu.memory_space<vmem>>, vector<2x1x8x8xf32>
    %14 = vector.shape_cast %13 : vector<2x1x8x8xf32> to vector<2x8x8xf32>
    %c2_20 = arith.constant 2 : index
    %c0_21 = arith.constant 0 : index
    %c0_22 = arith.constant 0 : index
    %c0_23 = arith.constant 0 : index
    %15 = vector.load %arg2[%c2_20, %c0_21, %c0_22, %c0_23] : memref<3x2x8x32xf32, #tpu.memory_space<vmem>>, vector<1x2x8x32xf32>
    %16 = vector.shape_cast %15 : vector<1x2x8x32xf32> to vector<2x8x32xf32>
    "tpu.trace_start"() <{level = 10 : i32, message = "bij,bjd->bid"}> : () -> ()
    %cst_24 = arith.constant dense<0.000000e+00> : vector<2x8x32xf32>
    %17 = tpu.matmul %14, %16, %cst_24 {dimension_numbers = #tpu.dot_dimension_numbers<[2], [1], [1], [2], [0, 0, 0, 1, 1, 2], [0], [0]>} : vector<2x8x8xf32>, vector<2x8x32xf32>, vector<2x8x32xf32> -> vector<2x8x32xf32>
    "tpu.trace_stop"() : () -> ()
    %18 = vector.shape_cast %17 : vector<2x8x32xf32> to vector<16x32xf32>
    %c0_25 = arith.constant 0 : index
    %c0_26 = arith.constant 0 : index
    %c0_27 = arith.constant 0 : index
    %c0_28 = arith.constant 0 : index
    %19 = vector.load %arg4[%c0_25, %c0_26, %c0_27, %c0_28] : memref<3x3x32x32xf32, #tpu.memory_space<vmem>>, vector<1x1x32x32xf32>
    %20 = vector.shape_cast %19 : vector<1x1x32x32xf32> to vector<32x32xf32>
    %cst_29 = arith.constant dense<0.000000e+00> : vector<16x32xf32>
    %21 = tpu.matmul %6, %20, %cst_29 {dimension_numbers = #tpu.dot_dimension_numbers<[1], [0], [0], [1], [0, 0, 1, 1], [], []>} : vector<16x32xf32>, vector<32x32xf32>, vector<16x32xf32> -> vector<16x32xf32>
    %c0_30 = arith.constant 0 : index
    %c1_31 = arith.constant 1 : index
    %c0_32 = arith.constant 0 : index
    %c0_33 = arith.constant 0 : index
    %22 = vector.load %arg4[%c0_30, %c1_31, %c0_32, %c0_33] : memref<3x3x32x32xf32, #tpu.memory_space<vmem>>, vector<1x1x32x32xf32>
    %23 = vector.shape_cast %22 : vector<1x1x32x32xf32> to vector<32x32xf32>
    %cst_34 = arith.constant dense<0.000000e+00> : vector<16x32xf32>
    %24 = tpu.matmul %12, %23, %cst_34 {dimension_numbers = #tpu.dot_dimension_numbers<[1], [0], [0], [1], [0, 0, 1, 1], [], []>} : vector<16x32xf32>, vector<32x32xf32>, vector<16x32xf32> -> vector<16x32xf32>
    %25 = arith.addf %21, %24 : vector<16x32xf32>
    %c0_35 = arith.constant 0 : index
    %c2_36 = arith.constant 2 : index
    %c0_37 = arith.constant 0 : index
    %c0_38 = arith.constant 0 : index
    %26 = vector.load %arg4[%c0_35, %c2_36, %c0_37, %c0_38] : memref<3x3x32x32xf32, #tpu.memory_space<vmem>>, vector<1x1x32x32xf32>
    %27 = vector.shape_cast %26 : vector<1x1x32x32xf32> to vector<32x32xf32>
    %cst_39 = arith.constant dense<0.000000e+00> : vector<16x32xf32>
    %28 = tpu.matmul %18, %27, %cst_39 {dimension_numbers = #tpu.dot_dimension_numbers<[1], [0], [0], [1], [0, 0, 1, 1], [], []>} : vector<16x32xf32>, vector<32x32xf32>, vector<16x32xf32> -> vector<16x32xf32>
    %29 = arith.addf %25, %28 : vector<16x32xf32>
    %c0_40 = arith.constant 0 : index
    %c0_41 = arith.constant 0 : index
    %c0_42 = arith.constant 0 : index
    %30 = vector.load %arg5[%c0_40, %c0_41, %c0_42] : memref<3x32x32xf32, #tpu.memory_space<vmem>>, vector<1x32x32xf32>
    %31 = vector.shape_cast %30 : vector<1x32x32xf32> to vector<32x32xf32>
    %cst_43 = arith.constant dense<0.000000e+00> : vector<16x32xf32>
    %32 = tpu.matmul %0, %31, %cst_43 {dimension_numbers = #tpu.dot_dimension_numbers<[1], [0], [0], [1], [0, 0, 1, 1], [], []>} : vector<16x32xf32>, vector<32x32xf32>, vector<16x32xf32> -> vector<16x32xf32>
    %33 = arith.addf %29, %32 : vector<16x32xf32>
    %c0_44 = arith.constant 0 : index
    %c0_45 = arith.constant 0 : index
    %c0_46 = arith.constant 0 : index
    %34 = vector.load %arg6[%c0_44, %c0_45, %c0_46] : memref<4x1x32xf32, #tpu.memory_space<vmem>>, vector<1x1x32xf32>
    %35 = vector.shape_cast %34 : vector<1x1x32xf32> to vector<1x32xf32>
    %36 = vector.broadcast %35 : vector<1x32xf32> to vector<16x32xf32>
    %37 = arith.addf %33, %36 : vector<16x32xf32>
    %38 = arith.negf %37 : vector<16x32xf32>
    %39 = math.exp %38 : vector<16x32xf32>
    %cst_47 = arith.constant 1.000000e+00 : f32
    %40 = vector.broadcast %cst_47 : f32 to vector<16x32xf32>
    %41 = arith.addf %40, %39 : vector<16x32xf32>
    %42 = arith.divf %40, %41 : vector<16x32xf32>
    %c1_48 = arith.constant 1 : index
    %c0_49 = arith.constant 0 : index
    %c0_50 = arith.constant 0 : index
    %c0_51 = arith.constant 0 : index
    %43 = vector.load %arg4[%c1_48, %c0_49, %c0_50, %c0_51] : memref<3x3x32x32xf32, #tpu.memory_space<vmem>>, vector<1x1x32x32xf32>
    %44 = vector.shape_cast %43 : vector<1x1x32x32xf32> to vector<32x32xf32>
    %cst_52 = arith.constant dense<0.000000e+00> : vector<16x32xf32>
    %45 = tpu.matmul %6, %44, %cst_52 {dimension_numbers = #tpu.dot_dimension_numbers<[1], [0], [0], [1], [0, 0, 1, 1], [], []>} : vector<16x32xf32>, vector<32x32xf32>, vector<16x32xf32> -> vector<16x32xf32>
    %c1_53 = arith.constant 1 : index
    %c1_54 = arith.constant 1 : index
    %c0_55 = arith.constant 0 : index
    %c0_56 = arith.constant 0 : index
    %46 = vector.load %arg4[%c1_53, %c1_54, %c0_55, %c0_56] : memref<3x3x32x32xf32, #tpu.memory_space<vmem>>, vector<1x1x32x32xf32>
    %47 = vector.shape_cast %46 : vector<1x1x32x32xf32> to vector<32x32xf32>
    %cst_57 = arith.constant dense<0.000000e+00> : vector<16x32xf32>
    %48 = tpu.matmul %12, %47, %cst_57 {dimension_numbers = #tpu.dot_dimension_numbers<[1], [0], [0], [1], [0, 0, 1, 1], [], []>} : vector<16x32xf32>, vector<32x32xf32>, vector<16x32xf32> -> vector<16x32xf32>
    %49 = arith.addf %45, %48 : vector<16x32xf32>
    %c1_58 = arith.constant 1 : index
    %c2_59 = arith.constant 2 : index
    %c0_60 = arith.constant 0 : index
    %c0_61 = arith.constant 0 : index
    %50 = vector.load %arg4[%c1_58, %c2_59, %c0_60, %c0_61] : memref<3x3x32x32xf32, #tpu.memory_space<vmem>>, vector<1x1x32x32xf32>
    %51 = vector.shape_cast %50 : vector<1x1x32x32xf32> to vector<32x32xf32>
    %cst_62 = arith.constant dense<0.000000e+00> : vector<16x32xf32>
    %52 = tpu.matmul %18, %51, %cst_62 {dimension_numbers = #tpu.dot_dimension_numbers<[1], [0], [0], [1], [0, 0, 1, 1], [], []>} : vector<16x32xf32>, vector<32x32xf32>, vector<16x32xf32> -> vector<16x32xf32>
    %53 = arith.addf %49, %52 : vector<16x32xf32>
    %c1_63 = arith.constant 1 : index
    %c0_64 = arith.constant 0 : index
    %c0_65 = arith.constant 0 : index
    %54 = vector.load %arg5[%c1_63, %c0_64, %c0_65] : memref<3x32x32xf32, #tpu.memory_space<vmem>>, vector<1x32x32xf32>
    %55 = vector.shape_cast %54 : vector<1x32x32xf32> to vector<32x32xf32>
    %cst_66 = arith.constant dense<0.000000e+00> : vector<16x32xf32>
    %56 = tpu.matmul %0, %55, %cst_66 {dimension_numbers = #tpu.dot_dimension_numbers<[1], [0], [0], [1], [0, 0, 1, 1], [], []>} : vector<16x32xf32>, vector<32x32xf32>, vector<16x32xf32> -> vector<16x32xf32>
    %57 = arith.addf %53, %56 : vector<16x32xf32>
    %c1_67 = arith.constant 1 : index
    %c0_68 = arith.constant 0 : index
    %c0_69 = arith.constant 0 : index
    %58 = vector.load %arg6[%c1_67, %c0_68, %c0_69] : memref<4x1x32xf32, #tpu.memory_space<vmem>>, vector<1x1x32xf32>
    %59 = vector.shape_cast %58 : vector<1x1x32xf32> to vector<1x32xf32>
    %60 = vector.broadcast %59 : vector<1x32xf32> to vector<16x32xf32>
    %61 = arith.addf %57, %60 : vector<16x32xf32>
    %62 = arith.negf %61 : vector<16x32xf32>
    %63 = math.exp %62 : vector<16x32xf32>
    %cst_70 = arith.constant 1.000000e+00 : f32
    %64 = vector.broadcast %cst_70 : f32 to vector<16x32xf32>
    %65 = arith.addf %64, %63 : vector<16x32xf32>
    %66 = arith.divf %64, %65 : vector<16x32xf32>
    %c2_71 = arith.constant 2 : index
    %c0_72 = arith.constant 0 : index
    %c0_73 = arith.constant 0 : index
    %c0_74 = arith.constant 0 : index
    %67 = vector.load %arg4[%c2_71, %c0_72, %c0_73, %c0_74] : memref<3x3x32x32xf32, #tpu.memory_space<vmem>>, vector<1x1x32x32xf32>
    %68 = vector.shape_cast %67 : vector<1x1x32x32xf32> to vector<32x32xf32>
    %cst_75 = arith.constant dense<0.000000e+00> : vector<16x32xf32>
    %69 = tpu.matmul %6, %68, %cst_75 {dimension_numbers = #tpu.dot_dimension_numbers<[1], [0], [0], [1], [0, 0, 1, 1], [], []>} : vector<16x32xf32>, vector<32x32xf32>, vector<16x32xf32> -> vector<16x32xf32>
    %c2_76 = arith.constant 2 : index
    %c1_77 = arith.constant 1 : index
    %c0_78 = arith.constant 0 : index
    %c0_79 = arith.constant 0 : index
    %70 = vector.load %arg4[%c2_76, %c1_77, %c0_78, %c0_79] : memref<3x3x32x32xf32, #tpu.memory_space<vmem>>, vector<1x1x32x32xf32>
    %71 = vector.shape_cast %70 : vector<1x1x32x32xf32> to vector<32x32xf32>
    %cst_80 = arith.constant dense<0.000000e+00> : vector<16x32xf32>
    %72 = tpu.matmul %12, %71, %cst_80 {dimension_numbers = #tpu.dot_dimension_numbers<[1], [0], [0], [1], [0, 0, 1, 1], [], []>} : vector<16x32xf32>, vector<32x32xf32>, vector<16x32xf32> -> vector<16x32xf32>
    %73 = arith.addf %69, %72 : vector<16x32xf32>
    %c2_81 = arith.constant 2 : index
    %c2_82 = arith.constant 2 : index
    %c0_83 = arith.constant 0 : index
    %c0_84 = arith.constant 0 : index
    %74 = vector.load %arg4[%c2_81, %c2_82, %c0_83, %c0_84] : memref<3x3x32x32xf32, #tpu.memory_space<vmem>>, vector<1x1x32x32xf32>
    %75 = vector.shape_cast %74 : vector<1x1x32x32xf32> to vector<32x32xf32>
    %cst_85 = arith.constant dense<0.000000e+00> : vector<16x32xf32>
    %76 = tpu.matmul %18, %75, %cst_85 {dimension_numbers = #tpu.dot_dimension_numbers<[1], [0], [0], [1], [0, 0, 1, 1], [], []>} : vector<16x32xf32>, vector<32x32xf32>, vector<16x32xf32> -> vector<16x32xf32>
    %77 = arith.addf %73, %76 : vector<16x32xf32>
    %c2_86 = arith.constant 2 : index
    %c0_87 = arith.constant 0 : index
    %c0_88 = arith.constant 0 : index
    %78 = vector.load %arg6[%c2_86, %c0_87, %c0_88] : memref<4x1x32xf32, #tpu.memory_space<vmem>>, vector<1x1x32xf32>
    %79 = vector.shape_cast %78 : vector<1x1x32xf32> to vector<1x32xf32>
    %80 = vector.broadcast %79 : vector<1x32xf32> to vector<16x32xf32>
    %81 = arith.addf %77, %80 : vector<16x32xf32>
    %c2_89 = arith.constant 2 : index
    %c0_90 = arith.constant 0 : index
    %c0_91 = arith.constant 0 : index
    %82 = vector.load %arg5[%c2_89, %c0_90, %c0_91] : memref<3x32x32xf32, #tpu.memory_space<vmem>>, vector<1x32x32xf32>
    %83 = vector.shape_cast %82 : vector<1x32x32xf32> to vector<32x32xf32>
    %cst_92 = arith.constant dense<0.000000e+00> : vector<16x32xf32>
    %84 = tpu.matmul %0, %83, %cst_92 {dimension_numbers = #tpu.dot_dimension_numbers<[1], [0], [0], [1], [0, 0, 1, 1], [], []>} : vector<16x32xf32>, vector<32x32xf32>, vector<16x32xf32> -> vector<16x32xf32>
    %c3 = arith.constant 3 : index
    %c0_93 = arith.constant 0 : index
    %c0_94 = arith.constant 0 : index
    %85 = vector.load %arg6[%c3, %c0_93, %c0_94] : memref<4x1x32xf32, #tpu.memory_space<vmem>>, vector<1x1x32xf32>
    %86 = vector.shape_cast %85 : vector<1x1x32xf32> to vector<1x32xf32>
    %87 = vector.broadcast %86 : vector<1x32xf32> to vector<16x32xf32>
    %88 = arith.addf %84, %87 : vector<16x32xf32>
    %89 = arith.mulf %42, %88 : vector<16x32xf32>
    %90 = arith.addf %81, %89 : vector<16x32xf32>
    %91 = math.tanh %90 : vector<16x32xf32>
    %cst_95 = arith.constant 1.000000e+00 : f32
    %92 = vector.broadcast %cst_95 : f32 to vector<16x32xf32>
    %93 = arith.subf %92, %66 : vector<16x32xf32>
    %94 = arith.mulf %93, %91 : vector<16x32xf32>
    %95 = arith.mulf %66, %0 : vector<16x32xf32>
    %96 = arith.addf %94, %95 : vector<16x32xf32>
    %c0_96 = arith.constant 0 : index
    %c0_97 = arith.constant 0 : index
    %97 = vector.load %arg7[%c0_96, %c0_97] : memref<16x32xf32, #tpu.memory_space<vmem>>, vector<16x32xf32>
    tpu.vector_store %arg7[%c0_96, %c0_97], %96 {strides = array<i32>} : memref<16x32xf32, #tpu.memory_space<vmem>>, vector<16x32xf32>,
    return
  }
  func.func @transform_0(%arg0: i32) -> (i32, i32, i32, i32) {
    %c0_i32 = arith.constant 0 : i32
    %c0_i32_0 = arith.constant 0 : i32
    %c0_i32_1 = arith.constant 0 : i32
    %c0_i32_2 = arith.constant 0 : i32
    return %arg0, %c0_i32, %c0_i32_0, %c0_i32_1 : i32, i32, i32, i32
  }
  func.func @transform_1(%arg0: i32) -> (i32, i32, i32, i32) {
    %c0_i32 = arith.constant 0 : i32
    %c0_i32_0 = arith.constant 0 : i32
    %c0_i32_1 = arith.constant 0 : i32
    %c0_i32_2 = arith.constant 0 : i32
    return %c0_i32, %arg0, %c0_i32_0, %c0_i32_1 : i32, i32, i32, i32
  }
  func.func @transform_2(%arg0: i32) -> (i32, i32) {
    %c0_i32 = arith.constant 0 : i32
    %c0_i32_0 = arith.constant 0 : i32
    return %arg0, %c0_i32 : i32, i32
  }
  func.func @transform_3(%arg0: i32) -> (i32, i32, i32, i32) {
    %c0_i32 = arith.constant 0 : i32
    %c0_i32_0 = arith.constant 0 : i32
    %c0_i32_1 = arith.constant 0 : i32
    %c0_i32_2 = arith.constant 0 : i32
    %c0_i32_3 = arith.constant 0 : i32
    return %c0_i32, %c0_i32_0, %c0_i32_1, %c0_i32_2 : i32, i32, i32, i32
  }
  func.func @transform_4(%arg0: i32) -> (i32, i32, i32) {
    %c0_i32 = arith.constant 0 : i32
    %c0_i32_0 = arith.constant 0 : i32
    %c0_i32_1 = arith.constant 0 : i32
    %c0_i32_2 = arith.constant 0 : i32
    return %c0_i32, %c0_i32_0, %c0_i32_1 : i32, i32, i32
  }
  func.func @transform_5(%arg0: i32) -> (i32, i32, i32) {
    %c0_i32 = arith.constant 0 : i32
    %c0_i32_0 = arith.constant 0 : i32
    %c0_i32_1 = arith.constant 0 : i32
    %c0_i32_2 = arith.constant 0 : i32
    return %c0_i32, %c0_i32_0, %c0_i32_1 : i32, i32, i32
  }
  func.func @transform_6(%arg0: i32) -> (i32, i32) {
    %c0_i32 = arith.constant 0 : i32
    %c0_i32_0 = arith.constant 0 : i32
    return %arg0, %c0_i32 : i32, i32
  }
}

</mosaic_0001>

<llo_original>
// kernel: tpu_custom_call.1
$region0: #{tpu_custom_call.1}
  #allocation0 [shape = 'u32[]', space=smem, size = 0x4, offset = 0x4, fixed_abs, tag = 'smem constant byte address 0x4 - core index']
  #allocation1 [shape = 'u32[144,128]{1,0:T(1,128)}', space=vmem, size = 0x12000, scoped, tag = 'internal scratch']
  %s0 = inlined_call_operand.hbm [shape: f32[2,3,8,8], index: 0, kind: input, shape index: {}]
  %s1 = inlined_call_operand.hbm [shape: f32[3,2,8,32], index: 1, kind: input, shape index: {}]
  %s2 = inlined_call_operand.hbm [shape: f32[16,32], index: 2, kind: input, shape index: {}]
  %s3 = inlined_call_operand.hbm [shape: f32[3,3,32,32], index: 3, kind: input, shape index: {}]
  %s4 = inlined_call_operand.hbm [shape: f32[3,32,32], index: 4, kind: input, shape index: {}]
  %s5 = inlined_call_operand.vmem [shape: f32[4,1,32], index: 5, kind: input, shape index: {}]
  %s6 = inlined_call_operand.hbm [shape: f32[16,32], index: 6, kind: output, shape index: {}]
  %s7 = sld [smem:[#allocation0]]
  $region54: #{tpu_custom_call.1} parent=0
    _
  %s9 = ssub.s32 1, %s7
  %s10 = scalar_select 0, %s9, %s7
  $region1: #{tpu_custom_call.1} parent=0
    #allocation2 [shape = 'u8[24576]{0}', space=vmem, size = 0x6000, scoped, tag = 'input window, operand 0, single buffered']
    #allocation3 [shape = 's32[1]{0}', space=sflag, size = 0x4, scoped, tag = 'scoped memory for tpu_custom_call.1']
    #allocation4 [shape = 's32[1]{0}', space=sflag, size = 0x4, scoped, tag = 'scoped memory for tpu_custom_call.1']
    #allocation5 [shape = 'u8[24576]{0}', space=vmem, size = 0x6000, scoped, tag = 'input window, operand 1, single buffered']
    #allocation6 [shape = 's32[1]{0}', space=sflag, size = 0x4, scoped, tag = 'scoped memory for tpu_custom_call.1']
    #allocation7 [shape = 'u8[8192]{0}', space=vmem, size = 0x2000, scoped, tag = 'input window, operand 2, single buffered']
    #allocation8 [shape = 'u8[147456]{0}', space=vmem, size = 0x24000, scoped, tag = 'input window, operand 3, single buffered']
    #allocation9 [shape = 's32[1]{0}', space=sflag, size = 0x4, scoped, tag = 'scoped memory for tpu_custom_call.1']
    #allocation10 [shape = 'u8[49152]{0}', space=vmem, size = 0xc000, scoped, tag = 'input window, operand 4, single buffered']
    #allocation11 [shape = 'u8[8192]{0}', space=vmem, size = 0x2000, scoped, tag = 'output window, operand 0, single buffered']
    %11 = vsyncpa [#allocation3], 0
    %12 = vsyncpa [#allocation6], 0
    %13 = vsyncpa [#allocation9], 0
    %14 = vsyncpa [#allocation4], 0
    // Predicated region
    $region2: #{tpu_custom_call.1} parent=1 // pred_check
      _
    $region3: #{tpu_custom_call.1} parent=1 // pred_check_branch
      %16 = sbr.rel (0) target = $region5
    $region4: #{tpu_custom_call.1} parent=1 // pred_region
      %s18 = ssub.s32 768, 768
      %19 = vsyncadd [#allocation3], %s18
      %s20 = sshll.u32 [#allocation2], 4
      %s21 = int_to_ptr.vmem [resolvable:$true] %s20
      %26 = dma.hbm_to_vmem [thread:$0]  %s0, 768, %s21, [#allocation3], 128, 128, 8
    $region5: #{tpu_custom_call.1} parent=1 // pred_fallthru
      _
    // Predicated region
    $region6: #{tpu_custom_call.1} parent=1 // pred_check
      _
    $region7: #{tpu_custom_call.1} parent=1 // pred_check_branch
      %28 = sbr.rel (0) target = $region9
    $region8: #{tpu_custom_call.1} parent=1 // pred_region
      %s30 = ssub.s32 768, 768
      %31 = vsyncadd [#allocation6], %s30
      %s32 = sshll.u32 [#allocation5], 4
      %s33 = int_to_ptr.vmem [resolvable:$true] %s32
      %38 = dma.hbm_to_vmem [thread:$0]  %s1, 768, %s33, [#allocation6], 128, 128, 8
    $region9: #{tpu_custom_call.1} parent=1 // pred_fallthru
      _
    // Predicated region
    $region10: #{tpu_custom_call.1} parent=1 // pred_check
      _
    $region11: #{tpu_custom_call.1} parent=1 // pred_check_branch
      %40 = sbr.rel (0) target = $region13
    $region12: #{tpu_custom_call.1} parent=1 // pred_region
      %s42 = ssub.s32 256, 256
      %43 = vsyncadd [#allocation6], %s42
      %s44 = sshll.u32 [#allocation7], 4
      %s45 = int_to_ptr.vmem [resolvable:$true] %s44
      %50 = dma.hbm_to_vmem [thread:$0]  %s2, 256, %s45, [#allocation6], 128, 128, 8
    $region13: #{tpu_custom_call.1} parent=1 // pred_fallthru
      _
    // Predicated region
    $region14: #{tpu_custom_call.1} parent=1 // pred_check
      _
    $region15: #{tpu_custom_call.1} parent=1 // pred_check_branch
      %52 = sbr.rel (0) target = $region17
    $region16: #{tpu_custom_call.1} parent=1 // pred_region
      %s54 = ssub.s32 4608, 4608
      %55 = vsyncadd [#allocation9], %s54
      %s56 = sshll.u32 [#allocation8], 4
      %s57 = int_to_ptr.vmem [resolvable:$true] %s56
      %62 = dma.hbm_to_vmem [thread:$0]  %s3, 4608, %s57, [#allocation9], 128, 128, 8
    $region17: #{tpu_custom_call.1} parent=1 // pred_fallthru
      _
    // Predicated region
    $region18: #{tpu_custom_call.1} parent=1 // pred_check
      _
    $region19: #{tpu_custom_call.1} parent=1 // pred_check_branch
      %64 = sbr.rel (0) target = $region21
    $region20: #{tpu_custom_call.1} parent=1 // pred_region
      %s66 = ssub.s32 1536, 1536
      %67 = vsyncadd [#allocation9], %s66
      %s68 = sshll.u32 [#allocation10], 4
      %s69 = int_to_ptr.vmem [resolvable:$true] %s68
      %74 = dma.hbm_to_vmem [thread:$0]  %s4, 1536, %s69, [#allocation9], 128, 128, 8
    $region21: #{tpu_custom_call.1} parent=1 // pred_fallthru
      _
    // Predicated region
    $region22: #{tpu_custom_call.1} parent=1 // pred_check
      _
    $region23: #{tpu_custom_call.1} parent=1 // pred_check_branch
      %76 = sbr.rel (0) target = $region25
    $region24: #{tpu_custom_call.1} parent=1 // pred_region
      _
    $region25: #{tpu_custom_call.1} parent=1 // pred_fallthru
      _
    // Predicated region
    $region26: #{tpu_custom_call.1} parent=1 // pred_check
      _
    $region27: #{tpu_custom_call.1} parent=1 // pred_check_branch
      %78 = sbr.rel (0) target = $region29
    $region28: #{tpu_custom_call.1} parent=1 // pred_region
      %79 = dma.done [#allocation3], 768
    $region29: #{tpu_custom_call.1} parent=1 // pred_fallthru
      _
    // Predicated region
    $region30: #{tpu_custom_call.1} parent=1 // pred_check
      _
    $region31: #{tpu_custom_call.1} parent=1 // pred_check_branch
      %81 = sbr.rel (0) target = $region33
    $region32: #{tpu_custom_call.1} parent=1 // pred_region
      %82 = dma.done [#allocation6], 768
    $region33: #{tpu_custom_call.1} parent=1 // pred_fallthru
      _
    // Predicated region
    $region34: #{tpu_custom_call.1} parent=1 // pred_check
      _
    $region35: #{tpu_custom_call.1} parent=1 // pred_check_branch
      %84 = sbr.rel (0) target = $region37
    $region36: #{tpu_custom_call.1} parent=1 // pred_region
      %85 = dma.done [#allocation6], 256
    $region37: #{tpu_custom_call.1} parent=1 // pred_fallthru
      _
    // Predicated region
    $region38: #{tpu_custom_call.1} parent=1 // pred_check
      _
    $region39: #{tpu_custom_call.1} parent=1 // pred_check_branch
      %87 = sbr.rel (0) target = $region41
    $region40: #{tpu_custom_call.1} parent=1 // pred_region
      %88 = dma.done [#allocation9], 4608
    $region41: #{tpu_custom_call.1} parent=1 // pred_fallthru
      _
    // Predicated region
    $region42: #{tpu_custom_call.1} parent=1 // pred_check
      _
    $region43: #{tpu_custom_call.1} parent=1 // pred_check_branch
      %90 = sbr.rel (0) target = $region45
    $region44: #{tpu_custom_call.1} parent=1 // pred_region
      %91 = dma.done [#allocation9], 1536
    $region45: #{tpu_custom_call.1} parent=1 // pred_fallthru
      _
    %v92 = vld [vmem:[#allocation7] sm:$0xff]
    %v93 = vld [vmem:[#allocation7 + $0x8] sm:$0xff]
    %v94 = vld [vmem:[#allocation2] sm:$0xff]
    %v95 = vld [vmem:[#allocation2 + $0x18] sm:$0xff]
    %v96 = vld [vmem:[#allocation5] sm:$0xff]
    %v97 = vld [vmem:[#allocation5 + $0x8] sm:$0xff]
    %vm98 = vcmask 64512
    %v100 = vsel %vm98, %v94, 0
    %102 = vmatprep.subr.mxu0 0.0
    %103 = vmatpush1.msra.mxu0 %v96
    %104 = vmatprep.subr.mxu0 0.0
    %105 = vmatpush1.msra.mxu0 0.0
    %106 = vmatprep.subr.mxu0 0.0
    %107 = vmatpush1.msra.mxu0 0.0
    %108 = vmatprep.subr.mxu0 0.0
    %109 = vmatpush1.msra.mxu0 0.0
    %110 = vmatprep.subr.mxu0 0.0
    %111 = vmatpush1.msra.mxu0 0.0
    %112 = vmatprep.subr.mxu0 0.0
    %113 = vmatpush1.msra.mxu0 0.0
    %114 = vmatprep.subr.mxu0 0.0
    %115 = vmatpush1.msra.mxu0 0.0
    %116 = vmatprep.subr.mxu0 0.0
    %117 = vmatpush1.msra.mxu0 0.0
    %118 = vmatprep.subr.mxu0 0.0
    %119 = vmatpush1.msra.mxu0 0.0
    %120 = vmatprep.subr.mxu0 0.0
    %121 = vmatpush1.msra.mxu0 0.0
    %122 = vmatprep.subr.mxu0 0.0
    %123 = vmatpush1.msra.mxu0 0.0
    %124 = vmatprep.subr.mxu0 0.0
    %125 = vmatpush1.msra.mxu0 0.0
    %126 = vmatprep.subr.mxu0 0.0
    %127 = vmatpush1.msra.mxu0 0.0
    %128 = vmatprep.subr.mxu0 0.0
    %129 = vmatpush1.msra.mxu0 0.0
    %130 = vmatprep.subr.mxu0 0.0
    %131 = vmatpush1.msra.mxu0 0.0
    %132 = vmatprep.subr.mxu0 0.0
    %133 = vmatpush1.msra.mxu0 0.0
    %134 = vmatprep.subr.mxu0 0.0
    %135 = vmatpush1.msra.mxu0 0.0
    %136 = vmatprep.subr.mxu0 0.0
    %137 = vmatpush1.msra.mxu0 0.0
    %138 = vmatprep.subr.mxu0 0.0
    %139 = vmatpush1.msra.mxu0 0.0
    %140 = vmatprep.subr.mxu0 0.0
    %141 = vmatpush1.msra.mxu0 0.0
    %142 = vmatprep.subr.mxu0 0.0
    %143 = vmatpush1.msra.mxu0 0.0
    %144 = vmatprep.subr.mxu0 0.0
    %145 = vmatpush1.msra.mxu0 0.0
    %146 = vmatprep.subr.mxu0 0.0
    %147 = vmatpush1.msra.mxu0 0.0
    %148 = vmatprep.subr.mxu0 0.0
    %149 = vmatpush1.msra.mxu0 0.0
    %150 = vmatprep.subr.mxu0 0.0
    %151 = vmatpush1.msra.mxu0 0.0
    %152 = vmatprep.subr.mxu0 0.0
    %153 = vmatpush1.msra.mxu0 0.0
    %154 = vmatprep.subr.mxu0 0.0
    %155 = vmatpush1.msra.mxu0 0.0
    %156 = vmatprep.subr.mxu0 0.0
    %157 = vmatpush1.msra.mxu0 0.0
    %158 = vmatprep.subr.mxu0 0.0
    %159 = vmatpush1.msra.mxu0 0.0
    %160 = vmatprep.subr.mxu0 0.0
    %161 = vmatpush1.msra.mxu0 0.0
    %162 = vmatprep.subr.mxu0 0.0
    %163 = vmatpush1.msra.mxu0 0.0
    %164 = vmatprep.subr.mxu0 0.0
    %165 = vmatpush1.msra.mxu0 0.0
    %166 = vmatprep.mubr.f32.mxu0 0.0
    %167 = vmatmul.mubr.f32.gmra.mrb[0].mxu0 %v100
    %v168 = vpop.f32.mrb[0].mxu0
    %v169 = vadd.f32 0.0, %v168
    %v170 = vpop.f32.mrb[0].mxu0
    %171 = vdwg.mxu0
    %v173 = vsel %vm98, %v95, 0
    %175 = vmatprep.subr.mxu0 0.0
    %176 = vmatpush1.msra.mxu0 %v97
    %177 = vmatprep.subr.mxu0 0.0
    %178 = vmatpush1.msra.mxu0 0.0
    %179 = vmatprep.subr.mxu0 0.0
    %180 = vmatpush1.msra.mxu0 0.0
    %181 = vmatprep.subr.mxu0 0.0
    %182 = vmatpush1.msra.mxu0 0.0
    %183 = vmatprep.subr.mxu0 0.0
    %184 = vmatpush1.msra.mxu0 0.0
    %185 = vmatprep.subr.mxu0 0.0
    %186 = vmatpush1.msra.mxu0 0.0
    %187 = vmatprep.subr.mxu0 0.0
    %188 = vmatpush1.msra.mxu0 0.0
    %189 = vmatprep.subr.mxu0 0.0
    %190 = vmatpush1.msra.mxu0 0.0
    %191 = vmatprep.subr.mxu0 0.0
    %192 = vmatpush1.msra.mxu0 0.0
    %193 = vmatprep.subr.mxu0 0.0
    %194 = vmatpush1.msra.mxu0 0.0
    %195 = vmatprep.subr.mxu0 0.0
    %196 = vmatpush1.msra.mxu0 0.0
    %197 = vmatprep.subr.mxu0 0.0
    %198 = vmatpush1.msra.mxu0 0.0
    %199 = vmatprep.subr.mxu0 0.0
    %200 = vmatpush1.msra.mxu0 0.0
    %201 = vmatprep.subr.mxu0 0.0
    %202 = vmatpush1.msra.mxu0 0.0
    %203 = vmatprep.subr.mxu0 0.0
    %204 = vmatpush1.msra.mxu0 0.0
    %205 = vmatprep.subr.mxu0 0.0
    %206 = vmatpush1.msra.mxu0 0.0
    %207 = vmatprep.subr.mxu0 0.0
    %208 = vmatpush1.msra.mxu0 0.0
    %209 = vmatprep.subr.mxu0 0.0
    %210 = vmatpush1.msra.mxu0 0.0
    %211 = vmatprep.subr.mxu0 0.0
    %212 = vmatpush1.msra.mxu0 0.0
    %213 = vmatprep.subr.mxu0 0.0
    %214 = vmatpush1.msra.mxu0 0.0
    %215 = vmatprep.subr.mxu0 0.0
    %216 = vmatpush1.msra.mxu0 0.0
    %217 = vmatprep.subr.mxu0 0.0
    %218 = vmatpush1.msra.mxu0 0.0
    %219 = vmatprep.subr.mxu0 0.0
    %220 = vmatpush1.msra.mxu0 0.0
    %221 = vmatprep.subr.mxu0 0.0
    %222 = vmatpush1.msra.mxu0 0.0
    %223 = vmatprep.subr.mxu0 0.0
    %224 = vmatpush1.msra.mxu0 0.0
    %225 = vmatprep.subr.mxu0 0.0
    %226 = vmatpush1.msra.mxu0 0.0
    %227 = vmatprep.subr.mxu0 0.0
    %228 = vmatpush1.msra.mxu0 0.0
    %229 = vmatprep.subr.mxu0 0.0
    %230 = vmatpush1.msra.mxu0 0.0
    %231 = vmatprep.subr.mxu0 0.0
    %232 = vmatpush1.msra.mxu0 0.0
    %233 = vmatprep.subr.mxu0 0.0
    %234 = vmatpush1.msra.mxu0 0.0
    %235 = vmatprep.subr.mxu0 0.0
    %236 = vmatpush1.msra.mxu0 0.0
    %237 = vmatprep.subr.mxu0 0.0
    %238 = vmatpush1.msra.mxu0 0.0
    %239 = vmatprep.mubr.f32.mxu0 0.0
    %240 = vmatmul.mubr.f32.gmra.mrb[0].mxu0 %v173
    %v241 = vpop.f32.mrb[0].mxu0
    %v242 = vadd.f32 0.0, %v241
    %v243 = vpop.f32.mrb[0].mxu0
    %244 = vdwg.mxu0
    %s245 = scalar_lea.vmem [#allocation2], 8
    %v246 = vld [vmem:[%s245] sm:$0xff]
    %v247 = vld [vmem:[%s245 + $0x18] sm:$0xff]
    %s248 = scalar_lea.vmem [#allocation5], 16
    %v249 = vld [vmem:[%s248] sm:$0xff]
    %v250 = vld [vmem:[%s248 + $0x8] sm:$0xff]
    %v252 = vsel %vm98, %v246, 0
    %254 = vmatprep.subr.mxu0 0.0
    %255 = vmatpush1.msra.mxu0 %v249
    %256 = vmatprep.subr.mxu0 0.0
    %257 = vmatpush1.msra.mxu0 0.0
    %258 = vmatprep.subr.mxu0 0.0
    %259 = vmatpush1.msra.mxu0 0.0
    %260 = vmatprep.subr.mxu0 0.0
    %261 = vmatpush1.msra.mxu0 0.0
    %262 = vmatprep.subr.mxu0 0.0
    %263 = vmatpush1.msra.mxu0 0.0
    %264 = vmatprep.subr.mxu0 0.0
    %265 = vmatpush1.msra.mxu0 0.0
    %266 = vmatprep.subr.mxu0 0.0
    %267 = vmatpush1.msra.mxu0 0.0
    %268 = vmatprep.subr.mxu0 0.0
    %269 = vmatpush1.msra.mxu0 0.0
    %270 = vmatprep.subr.mxu0 0.0
    %271 = vmatpush1.msra.mxu0 0.0
    %272 = vmatprep.subr.mxu0 0.0
    %273 = vmatpush1.msra.mxu0 0.0
    %274 = vmatprep.subr.mxu0 0.0
    %275 = vmatpush1.msra.mxu0 0.0
    %276 = vmatprep.subr.mxu0 0.0
    %277 = vmatpush1.msra.mxu0 0.0
    %278 = vmatprep.subr.mxu0 0.0
    %279 = vmatpush1.msra.mxu0 0.0
    %280 = vmatprep.subr.mxu0 0.0
    %281 = vmatpush1.msra.mxu0 0.0
    %282 = vmatprep.subr.mxu0 0.0
    %283 = vmatpush1.msra.mxu0 0.0
    %284 = vmatprep.subr.mxu0 0.0
    %285 = vmatpush1.msra.mxu0 0.0
    %286 = vmatprep.subr.mxu0 0.0
    %287 = vmatpush1.msra.mxu0 0.0
    %288 = vmatprep.subr.mxu0 0.0
    %289 = vmatpush1.msra.mxu0 0.0
    %290 = vmatprep.subr.mxu0 0.0
    %291 = vmatpush1.msra.mxu0 0.0
    %292 = vmatprep.subr.mxu0 0.0
    %293 = vmatpush1.msra.mxu0 0.0
    %294 = vmatprep.subr.mxu0 0.0
    %295 = vmatpush1.msra.mxu0 0.0
    %296 = vmatprep.subr.mxu0 0.0
    %297 = vmatpush1.msra.mxu0 0.0
    %298 = vmatprep.subr.mxu0 0.0
    %299 = vmatpush1.msra.mxu0 0.0
    %300 = vmatprep.subr.mxu0 0.0
    %301 = vmatpush1.msra.mxu0 0.0
    %302 = vmatprep.subr.mxu0 0.0
    %303 = vmatpush1.msra.mxu0 0.0
    %304 = vmatprep.subr.mxu0 0.0
    %305 = vmatpush1.msra.mxu0 0.0
    %306 = vmatprep.subr.mxu0 0.0
    %307 = vmatpush1.msra.mxu0 0.0
    %308 = vmatprep.subr.mxu0 0.0
    %309 = vmatpush1.msra.mxu0 0.0
    %310 = vmatprep.subr.mxu0 0.0
    %311 = vmatpush1.msra.mxu0 0.0
    %312 = vmatprep.subr.mxu0 0.0
    %313 = vmatpush1.msra.mxu0 0.0
    %314 = vmatprep.subr.mxu0 0.0
    %315 = vmatpush1.msra.mxu0 0.0
    %316 = vmatprep.subr.mxu0 0.0
    %317 = vmatpush1.msra.mxu0 0.0
    %318 = vmatprep.mubr.f32.mxu0 0.0
    %319 = vmatmul.mubr.f32.gmra.mrb[0].mxu0 %v252
    %v320 = vpop.f32.mrb[0].mxu0
    %v321 = vadd.f32 0.0, %v320
    %v322 = vpop.f32.mrb[0].mxu0
    %323 = vdwg.mxu0
    %v325 = vsel %vm98, %v247, 0
    %327 = vmatprep.subr.mxu0 0.0
    %328 = vmatpush1.msra.mxu0 %v250
    %329 = vmatprep.subr.mxu0 0.0
    %330 = vmatpush1.msra.mxu0 0.0
    %331 = vmatprep.subr.mxu0 0.0
    %332 = vmatpush1.msra.mxu0 0.0
    %333 = vmatprep.subr.mxu0 0.0
    %334 = vmatpush1.msra.mxu0 0.0
    %335 = vmatprep.subr.mxu0 0.0
    %336 = vmatpush1.msra.mxu0 0.0
    %337 = vmatprep.subr.mxu0 0.0
    %338 = vmatpush1.msra.mxu0 0.0
    %339 = vmatprep.subr.mxu0 0.0
    %340 = vmatpush1.msra.mxu0 0.0
    %341 = vmatprep.subr.mxu0 0.0
    %342 = vmatpush1.msra.mxu0 0.0
    %343 = vmatprep.subr.mxu0 0.0
    %344 = vmatpush1.msra.mxu0 0.0
    %345 = vmatprep.subr.mxu0 0.0
    %346 = vmatpush1.msra.mxu0 0.0
    %347 = vmatprep.subr.mxu0 0.0
    %348 = vmatpush1.msra.mxu0 0.0
    %349 = vmatprep.subr.mxu0 0.0
    %350 = vmatpush1.msra.mxu0 0.0
    %351 = vmatprep.subr.mxu0 0.0
    %352 = vmatpush1.msra.mxu0 0.0
    %353 = vmatprep.subr.mxu0 0.0
    %354 = vmatpush1.msra.mxu0 0.0
    %355 = vmatprep.subr.mxu0 0.0
    %356 = vmatpush1.msra.mxu0 0.0
    %357 = vmatprep.subr.mxu0 0.0
    %358 = vmatpush1.msra.mxu0 0.0
    %359 = vmatprep.subr.mxu0 0.0
    %360 = vmatpush1.msra.mxu0 0.0
    %361 = vmatprep.subr.mxu0 0.0
    %362 = vmatpush1.msra.mxu0 0.0
    %363 = vmatprep.subr.mxu0 0.0
    %364 = vmatpush1.msra.mxu0 0.0
    %365 = vmatprep.subr.mxu0 0.0
    %366 = vmatpush1.msra.mxu0 0.0
    %367 = vmatprep.subr.mxu0 0.0
    %368 = vmatpush1.msra.mxu0 0.0
    %369 = vmatprep.subr.mxu0 0.0
    %370 = vmatpush1.msra.mxu0 0.0
    %371 = vmatprep.subr.mxu0 0.0
    %372 = vmatpush1.msra.mxu0 0.0
    %373 = vmatprep.subr.mxu0 0.0
    %374 = vmatpush1.msra.mxu0 0.0
    %375 = vmatprep.subr.mxu0 0.0
    %376 = vmatpush1.msra.mxu0 0.0
    %377 = vmatprep.subr.mxu0 0.0
    %378 = vmatpush1.msra.mxu0 0.0
    %379 = vmatprep.subr.mxu0 0.0
    %380 = vmatpush1.msra.mxu0 0.0
    %381 = vmatprep.subr.mxu0 0.0
    %382 = vmatpush1.msra.mxu0 0.0
    %383 = vmatprep.subr.mxu0 0.0
    %384 = vmatpush1.msra.mxu0 0.0
    %385 = vmatprep.subr.mxu0 0.0
    %386 = vmatpush1.msra.mxu0 0.0
    %387 = vmatprep.subr.mxu0 0.0
    %388 = vmatpush1.msra.mxu0 0.0
    %389 = vmatprep.subr.mxu0 0.0
    %390 = vmatpush1.msra.mxu0 0.0
    %391 = vmatprep.mubr.f32.mxu0 0.0
    %392 = vmatmul.mubr.f32.gmra.mrb[0].mxu0 %v325
    %v393 = vpop.f32.mrb[0].mxu0
    %v394 = vadd.f32 0.0, %v393
    %v395 = vpop.f32.mrb[0].mxu0
    %396 = vdwg.mxu0
    %s397 = scalar_lea.vmem [#allocation2], 16
    %v398 = vld [vmem:[%s397] sm:$0xff]
    %v399 = vld [vmem:[%s397 + $0x18] sm:$0xff]
    %s400 = scalar_lea.vmem [#allocation5], 32
    %v401 = vld [vmem:[%s400] sm:$0xff]
    %v402 = vld [vmem:[%s400 + $0x8] sm:$0xff]
    %v404 = vsel %vm98, %v398, 0
    %406 = vmatprep.subr.mxu0 0.0
    %407 = vmatpush1.msra.mxu0 %v401
    %408 = vmatprep.subr.mxu0 0.0
    %409 = vmatpush1.msra.mxu0 0.0
    %410 = vmatprep.subr.mxu0 0.0
    %411 = vmatpush1.msra.mxu0 0.0
    %412 = vmatprep.subr.mxu0 0.0
    %413 = vmatpush1.msra.mxu0 0.0
    %414 = vmatprep.subr.mxu0 0.0
    %415 = vmatpush1.msra.mxu0 0.0
    %416 = vmatprep.subr.mxu0 0.0
    %417 = vmatpush1.msra.mxu0 0.0
    %418 = vmatprep.subr.mxu0 0.0
    %419 = vmatpush1.msra.mxu0 0.0
    %420 = vmatprep.subr.mxu0 0.0
    %421 = vmatpush1.msra.mxu0 0.0
    %422 = vmatprep.subr.mxu0 0.0
    %423 = vmatpush1.msra.mxu0 0.0
    %424 = vmatprep.subr.mxu0 0.0
    %425 = vmatpush1.msra.mxu0 0.0
    %426 = vmatprep.subr.mxu0 0.0
    %427 = vmatpush1.msra.mxu0 0.0
    %428 = vmatprep.subr.mxu0 0.0
    %429 = vmatpush1.msra.mxu0 0.0
    %430 = vmatprep.subr.mxu0 0.0
    %431 = vmatpush1.msra.mxu0 0.0
    %432 = vmatprep.subr.mxu0 0.0
    %433 = vmatpush1.msra.mxu0 0.0
    %434 = vmatprep.subr.mxu0 0.0
    %435 = vmatpush1.msra.mxu0 0.0
    %436 = vmatprep.subr.mxu0 0.0
    %437 = vmatpush1.msra.mxu0 0.0
    %438 = vmatprep.subr.mxu0 0.0
    %439 = vmatpush1.msra.mxu0 0.0
    %440 = vmatprep.subr.mxu0 0.0
    %441 = vmatpush1.msra.mxu0 0.0
    %442 = vmatprep.subr.mxu0 0.0
    %443 = vmatpush1.msra.mxu0 0.0
    %444 = vmatprep.subr.mxu0 0.0
    %445 = vmatpush1.msra.mxu0 0.0
    %446 = vmatprep.subr.mxu0 0.0
    %447 = vmatpush1.msra.mxu0 0.0
    %448 = vmatprep.subr.mxu0 0.0
    %449 = vmatpush1.msra.mxu0 0.0
    %450 = vmatprep.subr.mxu0 0.0
    %451 = vmatpush1.msra.mxu0 0.0
    %452 = vmatprep.subr.mxu0 0.0
    %453 = vmatpush1.msra.mxu0 0.0
    %454 = vmatprep.subr.mxu0 0.0
    %455 = vmatpush1.msra.mxu0 0.0
    %456 = vmatprep.subr.mxu0 0.0
    %457 = vmatpush1.msra.mxu0 0.0
    %458 = vmatprep.subr.mxu0 0.0
    %459 = vmatpush1.msra.mxu0 0.0
    %460 = vmatprep.subr.mxu0 0.0
    %461 = vmatpush1.msra.mxu0 0.0
    %462 = vmatprep.subr.mxu0 0.0
    %463 = vmatpush1.msra.mxu0 0.0
    %464 = vmatprep.subr.mxu0 0.0
    %465 = vmatpush1.msra.mxu0 0.0
    %466 = vmatprep.subr.mxu0 0.0
    %467 = vmatpush1.msra.mxu0 0.0
    %468 = vmatprep.subr.mxu0 0.0
    %469 = vmatpush1.msra.mxu0 0.0
    %470 = vmatprep.mubr.f32.mxu0 0.0
    %471 = vmatmul.mubr.f32.gmra.mrb[0].mxu0 %v404
    %v472 = vpop.f32.mrb[0].mxu0
    %v473 = vadd.f32 0.0, %v472
    %v474 = vpop.f32.mrb[0].mxu0
    %475 = vdwg.mxu0
    %v477 = vsel %vm98, %v399, 0
    %479 = vmatprep.subr.mxu0 0.0
    %480 = vmatpush1.msra.mxu0 %v402
    %481 = vmatprep.subr.mxu0 0.0
    %482 = vmatpush1.msra.mxu0 0.0
    %483 = vmatprep.subr.mxu0 0.0
    %484 = vmatpush1.msra.mxu0 0.0
    %485 = vmatprep.subr.mxu0 0.0
    %486 = vmatpush1.msra.mxu0 0.0
    %487 = vmatprep.subr.mxu0 0.0
    %488 = vmatpush1.msra.mxu0 0.0
    %489 = vmatprep.subr.mxu0 0.0
    %490 = vmatpush1.msra.mxu0 0.0
    %491 = vmatprep.subr.mxu0 0.0
    %492 = vmatpush1.msra.mxu0 0.0
    %493 = vmatprep.subr.mxu0 0.0
    %494 = vmatpush1.msra.mxu0 0.0
    %495 = vmatprep.subr.mxu0 0.0
    %496 = vmatpush1.msra.mxu0 0.0
    %497 = vmatprep.subr.mxu0 0.0
    %498 = vmatpush1.msra.mxu0 0.0
    %499 = vmatprep.subr.mxu0 0.0
    %500 = vmatpush1.msra.mxu0 0.0
    %501 = vmatprep.subr.mxu0 0.0
    %502 = vmatpush1.msra.mxu0 0.0
    %503 = vmatprep.subr.mxu0 0.0
    %504 = vmatpush1.msra.mxu0 0.0
    %505 = vmatprep.subr.mxu0 0.0
    %506 = vmatpush1.msra.mxu0 0.0
    %507 = vmatprep.subr.mxu0 0.0
    %508 = vmatpush1.msra.mxu0 0.0
    %509 = vmatprep.subr.mxu0 0.0
    %510 = vmatpush1.msra.mxu0 0.0
    %511 = vmatprep.subr.mxu0 0.0
    %512 = vmatpush1.msra.mxu0 0.0
    %513 = vmatprep.subr.mxu0 0.0
    %514 = vmatpush1.msra.mxu0 0.0
    %515 = vmatprep.subr.mxu0 0.0
    %516 = vmatpush1.msra.mxu0 0.0
    %517 = vmatprep.subr.mxu0 0.0
    %518 = vmatpush1.msra.mxu0 0.0
    %519 = vmatprep.subr.mxu0 0.0
    %520 = vmatpush1.msra.mxu0 0.0
    %521 = vmatprep.subr.mxu0 0.0
    %522 = vmatpush1.msra.mxu0 0.0
    %523 = vmatprep.subr.mxu0 0.0
    %524 = vmatpush1.msra.mxu0 0.0
    %525 = vmatprep.subr.mxu0 0.0
    %526 = vmatpush1.msra.mxu0 0.0
    %527 = vmatprep.subr.mxu0 0.0
    %528 = vmatpush1.msra.mxu0 0.0
    %529 = vmatprep.subr.mxu0 0.0
    %530 = vmatpush1.msra.mxu0 0.0
    %531 = vmatprep.subr.mxu0 0.0
    %532 = vmatpush1.msra.mxu0 0.0
    %533 = vmatprep.subr.mxu0 0.0
    %534 = vmatpush1.msra.mxu0 0.0
    %535 = vmatprep.subr.mxu0 0.0
    %536 = vmatpush1.msra.mxu0 0.0
    %537 = vmatprep.subr.mxu0 0.0
    %538 = vmatpush1.msra.mxu0 0.0
    %539 = vmatprep.subr.mxu0 0.0
    %540 = vmatpush1.msra.mxu0 0.0
    %541 = vmatprep.subr.mxu0 0.0
    %542 = vmatpush1.msra.mxu0 0.0
    %543 = vmatprep.mubr.f32.mxu0 0.0
    %544 = vmatmul.mubr.f32.gmra.mrb[0].mxu0 %v477
    %v545 = vpop.f32.mrb[0].mxu0
    %v546 = vadd.f32 0.0, %v545
    %v547 = vpop.f32.mrb[0].mxu0
    %548 = vdwg.mxu0
    %v549 = vld [vmem:[#allocation8] sm:$0xff]
    %v550 = vld [vmem:[#allocation8 + $0x8] sm:$0xff]
    %v551 = vld [vmem:[#allocation8 + $0x10] sm:$0xff]
    %v552 = vld [vmem:[#allocation8 + $0x18] sm:$0xff]
    %s553 = scalar_lea.vmem [#allocation8], 32
    %v554 = vld [vmem:[%s553] sm:$0xff]
    %v555 = vld [vmem:[%s553 + $0x8] sm:$0xff]
    %v556 = vld [vmem:[%s553 + $0x10] sm:$0xff]
    %v557 = vld [vmem:[%s553 + $0x18] sm:$0xff]
    %vm558 = vcmask 261120
    %v560 = vsel %vm558, %v321, 0
    %v563 = vsel %vm558, %v394, 0
    %565 = vmatprep.subr.mxu0 0.0
    %566 = vmatpush1.msra.mxu0 %v554
    %567 = vmatprep.subr.mxu0 0.0
    %568 = vmatpush1.msra.mxu0 %v555
    %569 = vmatprep.subr.mxu0 0.0
    %570 = vmatpush1.msra.mxu0 %v556
    %571 = vmatprep.subr.mxu0 0.0
    %572 = vmatpush1.msra.mxu0 %v557
    %573 = vmatprep.subr.mxu0 0.0
    %574 = vmatpush1.msra.mxu0 0.0
    %575 = vmatprep.subr.mxu0 0.0
    %576 = vmatpush1.msra.mxu0 0.0
    %577 = vmatprep.subr.mxu0 0.0
    %578 = vmatpush1.msra.mxu0 0.0
    %579 = vmatprep.subr.mxu0 0.0
    %580 = vmatpush1.msra.mxu0 0.0
    %581 = vmatprep.subr.mxu0 0.0
    %582 = vmatpush1.msra.mxu0 0.0
    %583 = vmatprep.subr.mxu0 0.0
    %584 = vmatpush1.msra.mxu0 0.0
    %585 = vmatprep.subr.mxu0 0.0
    %586 = vmatpush1.msra.mxu0 0.0
    %587 = vmatprep.subr.mxu0 0.0
    %588 = vmatpush1.msra.mxu0 0.0
    %589 = vmatprep.subr.mxu0 0.0
    %590 = vmatpush1.msra.mxu0 0.0
    %591 = vmatprep.subr.mxu0 0.0
    %592 = vmatpush1.msra.mxu0 0.0
    %593 = vmatprep.subr.mxu0 0.0
    %594 = vmatpush1.msra.mxu0 0.0
    %595 = vmatprep.subr.mxu0 0.0
    %596 = vmatpush1.msra.mxu0 0.0
    %597 = vmatprep.subr.mxu0 0.0
    %598 = vmatpush1.msra.mxu0 0.0
    %599 = vmatprep.subr.mxu0 0.0
    %600 = vmatpush1.msra.mxu0 0.0
    %601 = vmatprep.subr.mxu0 0.0
    %602 = vmatpush1.msra.mxu0 0.0
    %603 = vmatprep.subr.mxu0 0.0
    %604 = vmatpush1.msra.mxu0 0.0
    %605 = vmatprep.subr.mxu0 0.0
    %606 = vmatpush1.msra.mxu0 0.0
    %607 = vmatprep.subr.mxu0 0.0
    %608 = vmatpush1.msra.mxu0 0.0
    %609 = vmatprep.subr.mxu0 0.0
    %610 = vmatpush1.msra.mxu0 0.0
    %611 = vmatprep.subr.mxu0 0.0
    %612 = vmatpush1.msra.mxu0 0.0
    %613 = vmatprep.subr.mxu0 0.0
    %614 = vmatpush1.msra.mxu0 0.0
    %615 = vmatprep.subr.mxu0 0.0
    %616 = vmatpush1.msra.mxu0 0.0
    %617 = vmatprep.subr.mxu0 0.0
    %618 = vmatpush1.msra.mxu0 0.0
    %619 = vmatprep.subr.mxu0 0.0
    %620 = vmatpush1.msra.mxu0 0.0
    %621 = vmatprep.subr.mxu0 0.0
    %622 = vmatpush1.msra.mxu0 0.0
    %623 = vmatprep.subr.mxu0 0.0
    %624 = vmatpush1.msra.mxu0 0.0
    %625 = vmatprep.subr.mxu0 0.0
    %626 = vmatpush1.msra.mxu0 0.0
    %627 = vmatprep.subr.mxu0 0.0
    %628 = vmatpush1.msra.mxu0 0.0
    %629 = vmatprep.mubr.f32.mxu0 0.0
    %630 = vmatmul.mubr.f32.gmra.mrb[0].mxu0 %v560
    %v631 = vpop.f32.mrb[0].mxu0
    %v632 = vadd.f32 0.0, %v631
    %v633 = vpop.f32.mrb[0].mxu0
    %634 = vmatprep.mubr.f32.mxu0 0.0
    %635 = vmatmul.mubr.f32.gmra.mrb[0].mxu0 %v563
    %v636 = vpop.f32.mrb[0].mxu0
    %v637 = vadd.f32 0.0, %v636
    %v638 = vpop.f32.mrb[0].mxu0
    %639 = vdwg.mxu0
    %v641 = vsel %vm558, %v169, 0
    %v644 = vsel %vm558, %v242, 0
    %646 = vmatprep.subr.mxu0 0.0
    %647 = vmatpush1.msra.mxu0 %v549
    %648 = vmatprep.subr.mxu0 0.0
    %649 = vmatpush1.msra.mxu0 %v550
    %650 = vmatprep.subr.mxu0 0.0
    %651 = vmatpush1.msra.mxu0 %v551
    %652 = vmatprep.subr.mxu0 0.0
    %653 = vmatpush1.msra.mxu0 %v552
    %654 = vmatprep.subr.mxu0 0.0
    %655 = vmatpush1.msra.mxu0 0.0
    %656 = vmatprep.subr.mxu0 0.0
    %657 = vmatpush1.msra.mxu0 0.0
    %658 = vmatprep.subr.mxu0 0.0
    %659 = vmatpush1.msra.mxu0 0.0
    %660 = vmatprep.subr.mxu0 0.0
    %661 = vmatpush1.msra.mxu0 0.0
    %662 = vmatprep.subr.mxu0 0.0
    %663 = vmatpush1.msra.mxu0 0.0
    %664 = vmatprep.subr.mxu0 0.0
    %665 = vmatpush1.msra.mxu0 0.0
    %666 = vmatprep.subr.mxu0 0.0
    %667 = vmatpush1.msra.mxu0 0.0
    %668 = vmatprep.subr.mxu0 0.0
    %669 = vmatpush1.msra.mxu0 0.0
    %670 = vmatprep.subr.mxu0 0.0
    %671 = vmatpush1.msra.mxu0 0.0
    %672 = vmatprep.subr.mxu0 0.0
    %673 = vmatpush1.msra.mxu0 0.0
    %674 = vmatprep.subr.mxu0 0.0
    %675 = vmatpush1.msra.mxu0 0.0
    %676 = vmatprep.subr.mxu0 0.0
    %677 = vmatpush1.msra.mxu0 0.0
    %678 = vmatprep.subr.mxu0 0.0
    %679 = vmatpush1.msra.mxu0 0.0
    %680 = vmatprep.subr.mxu0 0.0
    %681 = vmatpush1.msra.mxu0 0.0
    %682 = vmatprep.subr.mxu0 0.0
    %683 = vmatpush1.msra.mxu0 0.0
    %684 = vmatprep.subr.mxu0 0.0
    %685 = vmatpush1.msra.mxu0 0.0
    %686 = vmatprep.subr.mxu0 0.0
    %687 = vmatpush1.msra.mxu0 0.0
    %688 = vmatprep.subr.mxu0 0.0
    %689 = vmatpush1.msra.mxu0 0.0
    %690 = vmatprep.subr.mxu0 0.0
    %691 = vmatpush1.msra.mxu0 0.0
    %692 = vmatprep.subr.mxu0 0.0
    %693 = vmatpush1.msra.mxu0 0.0
    %694 = vmatprep.subr.mxu0 0.0
    %695 = vmatpush1.msra.mxu0 0.0
    %696 = vmatprep.subr.mxu0 0.0
    %697 = vmatpush1.msra.mxu0 0.0
    %698 = vmatprep.subr.mxu0 0.0
    %699 = vmatpush1.msra.mxu0 0.0
    %700 = vmatprep.subr.mxu0 0.0
    %701 = vmatpush1.msra.mxu0 0.0
    %702 = vmatprep.subr.mxu0 0.0
    %703 = vmatpush1.msra.mxu0 0.0
    %704 = vmatprep.subr.mxu0 0.0
    %705 = vmatpush1.msra.mxu0 0.0
    %706 = vmatprep.subr.mxu0 0.0
    %707 = vmatpush1.msra.mxu0 0.0
    %708 = vmatprep.subr.mxu0 0.0
    %709 = vmatpush1.msra.mxu0 0.0
    %710 = vmatprep.mubr.f32.mxu0 0.0
    %711 = vmatmul.mubr.f32.gmra.mrb[0].mxu0 %v641
    %v712 = vpop.f32.mrb[0].mxu0
    %v713 = vadd.f32 %v632, %v712
    %v714 = vpop.f32.mrb[0].mxu0
    %715 = vmatprep.mubr.f32.mxu0 0.0
    %716 = vmatmul.mubr.f32.gmra.mrb[0].mxu0 %v644
    %v717 = vpop.f32.mrb[0].mxu0
    %v718 = vadd.f32 %v637, %v717
    %v719 = vpop.f32.mrb[0].mxu0
    %720 = vdwg.mxu0
    %s721 = scalar_lea.vmem [#allocation8], 64
    %v722 = vld [vmem:[%s721] sm:$0xff]
    %v723 = vld [vmem:[%s721 + $0x8] sm:$0xff]
    %v724 = vld [vmem:[%s721 + $0x10] sm:$0xff]
    %v725 = vld [vmem:[%s721 + $0x18] sm:$0xff]
    %v727 = vsel %vm558, %v473, 0
    %v730 = vsel %vm558, %v546, 0
    %732 = vmatprep.subr.mxu0 0.0
    %733 = vmatpush1.msra.mxu0 %v722
    %734 = vmatprep.subr.mxu0 0.0
    %735 = vmatpush1.msra.mxu0 %v723
    %736 = vmatprep.subr.mxu0 0.0
    %737 = vmatpush1.msra.mxu0 %v724
    %738 = vmatprep.subr.mxu0 0.0
    %739 = vmatpush1.msra.mxu0 %v725
    %740 = vmatprep.subr.mxu0 0.0
    %741 = vmatpush1.msra.mxu0 0.0
    %742 = vmatprep.subr.mxu0 0.0
    %743 = vmatpush1.msra.mxu0 0.0
    %744 = vmatprep.subr.mxu0 0.0
    %745 = vmatpush1.msra.mxu0 0.0
    %746 = vmatprep.subr.mxu0 0.0
    %747 = vmatpush1.msra.mxu0 0.0
    %748 = vmatprep.subr.mxu0 0.0
    %749 = vmatpush1.msra.mxu0 0.0
    %750 = vmatprep.subr.mxu0 0.0
    %751 = vmatpush1.msra.mxu0 0.0
    %752 = vmatprep.subr.mxu0 0.0
    %753 = vmatpush1.msra.mxu0 0.0
    %754 = vmatprep.subr.mxu0 0.0
    %755 = vmatpush1.msra.mxu0 0.0
    %756 = vmatprep.subr.mxu0 0.0
    %757 = vmatpush1.msra.mxu0 0.0
    %758 = vmatprep.subr.mxu0 0.0
    %759 = vmatpush1.msra.mxu0 0.0
    %760 = vmatprep.subr.mxu0 0.0
    %761 = vmatpush1.msra.mxu0 0.0
    %762 = vmatprep.subr.mxu0 0.0
    %763 = vmatpush1.msra.mxu0 0.0
    %764 = vmatprep.subr.mxu0 0.0
    %765 = vmatpush1.msra.mxu0 0.0
    %766 = vmatprep.subr.mxu0 0.0
    %767 = vmatpush1.msra.mxu0 0.0
    %768 = vmatprep.subr.mxu0 0.0
    %769 = vmatpush1.msra.mxu0 0.0
    %770 = vmatprep.subr.mxu0 0.0
    %771 = vmatpush1.msra.mxu0 0.0
    %772 = vmatprep.subr.mxu0 0.0
    %773 = vmatpush1.msra.mxu0 0.0
    %774 = vmatprep.subr.mxu0 0.0
    %775 = vmatpush1.msra.mxu0 0.0
    %776 = vmatprep.subr.mxu0 0.0
    %777 = vmatpush1.msra.mxu0 0.0
    %778 = vmatprep.subr.mxu0 0.0
    %779 = vmatpush1.msra.mxu0 0.0
    %780 = vmatprep.subr.mxu0 0.0
    %781 = vmatpush1.msra.mxu0 0.0
    %782 = vmatprep.subr.mxu0 0.0
    %783 = vmatpush1.msra.mxu0 0.0
    %784 = vmatprep.subr.mxu0 0.0
    %785 = vmatpush1.msra.mxu0 0.0
    %786 = vmatprep.subr.mxu0 0.0
    %787 = vmatpush1.msra.mxu0 0.0
    %788 = vmatprep.subr.mxu0 0.0
    %789 = vmatpush1.msra.mxu0 0.0
    %790 = vmatprep.subr.mxu0 0.0
    %791 = vmatpush1.msra.mxu0 0.0
    %792 = vmatprep.subr.mxu0 0.0
    %793 = vmatpush1.msra.mxu0 0.0
    %794 = vmatprep.subr.mxu0 0.0
    %795 = vmatpush1.msra.mxu0 0.0
    %796 = vmatprep.mubr.f32.mxu0 0.0
    %797 = vmatmul.mubr.f32.gmra.mrb[0].mxu0 %v727
    %v798 = vpop.f32.mrb[0].mxu0
    %v799 = vadd.f32 0.0, %v798
    %v800 = vpop.f32.mrb[0].mxu0
    %801 = vmatprep.mubr.f32.mxu0 0.0
    %802 = vmatmul.mubr.f32.gmra.mrb[0].mxu0 %v730
    %v803 = vpop.f32.mrb[0].mxu0
    %v804 = vadd.f32 0.0, %v803
    %v805 = vpop.f32.mrb[0].mxu0
    %806 = vdwg.mxu0
    %v807 = vadd.f32 %v713, %v799
    %v808 = vadd.f32 %v718, %v804
    %v809 = vld [vmem:[#allocation10] sm:$0xff]
    %v810 = vld [vmem:[#allocation10 + $0x8] sm:$0xff]
    %v811 = vld [vmem:[#allocation10 + $0x10] sm:$0xff]
    %v812 = vld [vmem:[#allocation10 + $0x18] sm:$0xff]
    %v814 = vsel %vm558, %v92, 0
    %v817 = vsel %vm558, %v93, 0
    %819 = vmatprep.subr.mxu0 0.0
    %820 = vmatpush1.msra.mxu0 %v809
    %821 = vmatprep.subr.mxu0 0.0
    %822 = vmatpush1.msra.mxu0 %v810
    %823 = vmatprep.subr.mxu0 0.0
    %824 = vmatpush1.msra.mxu0 %v811
    %825 = vmatprep.subr.mxu0 0.0
    %826 = vmatpush1.msra.mxu0 %v812
    %827 = vmatprep.subr.mxu0 0.0
    %828 = vmatpush1.msra.mxu0 0.0
    %829 = vmatprep.subr.mxu0 0.0
    %830 = vmatpush1.msra.mxu0 0.0
    %831 = vmatprep.subr.mxu0 0.0
    %832 = vmatpush1.msra.mxu0 0.0
    %833 = vmatprep.subr.mxu0 0.0
    %834 = vmatpush1.msra.mxu0 0.0
    %835 = vmatprep.subr.mxu0 0.0
    %836 = vmatpush1.msra.mxu0 0.0
    %837 = vmatprep.subr.mxu0 0.0
    %838 = vmatpush1.msra.mxu0 0.0
    %839 = vmatprep.subr.mxu0 0.0
    %840 = vmatpush1.msra.mxu0 0.0
    %841 = vmatprep.subr.mxu0 0.0
    %842 = vmatpush1.msra.mxu0 0.0
    %843 = vmatprep.subr.mxu0 0.0
    %844 = vmatpush1.msra.mxu0 0.0
    %845 = vmatprep.subr.mxu0 0.0
    %846 = vmatpush1.msra.mxu0 0.0
    %847 = vmatprep.subr.mxu0 0.0
    %848 = vmatpush1.msra.mxu0 0.0
    %849 = vmatprep.subr.mxu0 0.0
    %850 = vmatpush1.msra.mxu0 0.0
    %851 = vmatprep.subr.mxu0 0.0
    %852 = vmatpush1.msra.mxu0 0.0
    %853 = vmatprep.subr.mxu0 0.0
    %854 = vmatpush1.msra.mxu0 0.0
    %855 = vmatprep.subr.mxu0 0.0
    %856 = vmatpush1.msra.mxu0 0.0
    %857 = vmatprep.subr.mxu0 0.0
    %858 = vmatpush1.msra.mxu0 0.0
    %859 = vmatprep.subr.mxu0 0.0
    %860 = vmatpush1.msra.mxu0 0.0
    %861 = vmatprep.subr.mxu0 0.0
    %862 = vmatpush1.msra.mxu0 0.0
    %863 = vmatprep.subr.mxu0 0.0
    %864 = vmatpush1.msra.mxu0 0.0
    %865 = vmatprep.subr.mxu0 0.0
    %866 = vmatpush1.msra.mxu0 0.0
    %867 = vmatprep.subr.mxu0 0.0
    %868 = vmatpush1.msra.mxu0 0.0
    %869 = vmatprep.subr.mxu0 0.0
    %870 = vmatpush1.msra.mxu0 0.0
    %871 = vmatprep.subr.mxu0 0.0
    %872 = vmatpush1.msra.mxu0 0.0
    %873 = vmatprep.subr.mxu0 0.0
    %874 = vmatpush1.msra.mxu0 0.0
    %875 = vmatprep.subr.mxu0 0.0
    %876 = vmatpush1.msra.mxu0 0.0
    %877 = vmatprep.subr.mxu0 0.0
    %878 = vmatpush1.msra.mxu0 0.0
    %879 = vmatprep.subr.mxu0 0.0
    %880 = vmatpush1.msra.mxu0 0.0
    %881 = vmatprep.subr.mxu0 0.0
    %882 = vmatpush1.msra.mxu0 0.0
    %883 = vmatprep.mubr.f32.mxu0 0.0
    %884 = vmatmul.mubr.f32.gmra.mrb[0].mxu0 %v814
    %v885 = vpop.f32.mrb[0].mxu0
    %v886 = vadd.f32 0.0, %v885
    %v887 = vpop.f32.mrb[0].mxu0
    %888 = vmatprep.mubr.f32.mxu0 0.0
    %889 = vmatmul.mubr.f32.gmra.mrb[0].mxu0 %v817
    %v890 = vpop.f32.mrb[0].mxu0
    %v891 = vadd.f32 0.0, %v890
    %v892 = vpop.f32.mrb[0].mxu0
    %893 = vdwg.mxu0
    %v894 = vadd.f32 %v807, %v886
    %v895 = vadd.f32 %v808, %v891
    %v896 = vld [vmem:[%s5] sm:$0x1]
    %v898 = vlaneseq
    %v899 = vshrl.u32 %v898, 7
    %v900 = vsub.s32 0, %v899
    %v901 = vrot.slane %v896, %v900
    %v903 = vadd.f32 %v894, %v901
    %v904 = vadd.f32 %v895, %v901
    %v905 = vxor.u32 %v903, 2147483648
    %v906 = vxor.u32 %v904, 2147483648
    %v907 = vmul.f32 %v905, 1.442695
    %v908 = vpow.pop %v907
    %v909 = vmul.f32 %v906, 1.442695
    %v910 = vpow.pop %v909
    %v911 = vadd.f32 %v908, 1.0
    %v912 = vadd.f32 %v910, 1.0
    %v913 = vrcp.pop %v911
    %v914 = vmul.f32 1.0, %v913
    %v915 = vrcp.pop %v912
    %v916 = vmul.f32 1.0, %v915
    %s917 = scalar_lea.vmem [#allocation8], 96
    %v918 = vld [vmem:[%s917] sm:$0xff]
    %v919 = vld [vmem:[%s917 + $0x8] sm:$0xff]
    %v920 = vld [vmem:[%s917 + $0x10] sm:$0xff]
    %v921 = vld [vmem:[%s917 + $0x18] sm:$0xff]
    %s922 = scalar_lea.vmem [#allocation8], 128
    %v923 = vld [vmem:[%s922] sm:$0xff]
    %v924 = vld [vmem:[%s922 + $0x8] sm:$0xff]
    %v925 = vld [vmem:[%s922 + $0x10] sm:$0xff]
    %v926 = vld [vmem:[%s922 + $0x18] sm:$0xff]
    %927 = vmatprep.subr.mxu0 0.0
    %928 = vmatpush1.msra.mxu0 %v923
    %929 = vmatprep.subr.mxu0 0.0
    %930 = vmatpush1.msra.mxu0 %v924
    %931 = vmatprep.subr.mxu0 0.0
    %932 = vmatpush1.msra.mxu0 %v925
    %933 = vmatprep.subr.mxu0 0.0
    %934 = vmatpush1.msra.mxu0 %v926
    %935 = vmatprep.subr.mxu0 0.0
    %936 = vmatpush1.msra.mxu0 0.0
    %937 = vmatprep.subr.mxu0 0.0
    %938 = vmatpush1.msra.mxu0 0.0
    %939 = vmatprep.subr.mxu0 0.0
    %940 = vmatpush1.msra.mxu0 0.0
    %941 = vmatprep.subr.mxu0 0.0
    %942 = vmatpush1.msra.mxu0 0.0
    %943 = vmatprep.subr.mxu0 0.0
    %944 = vmatpush1.msra.mxu0 0.0
    %945 = vmatprep.subr.mxu0 0.0
    %946 = vmatpush1.msra.mxu0 0.0
    %947 = vmatprep.subr.mxu0 0.0
    %948 = vmatpush1.msra.mxu0 0.0
    %949 = vmatprep.subr.mxu0 0.0
    %950 = vmatpush1.msra.mxu0 0.0
    %951 = vmatprep.subr.mxu0 0.0
    %952 = vmatpush1.msra.mxu0 0.0
    %953 = vmatprep.subr.mxu0 0.0
    %954 = vmatpush1.msra.mxu0 0.0
    %955 = vmatprep.subr.mxu0 0.0
    %956 = vmatpush1.msra.mxu0 0.0
    %957 = vmatprep.subr.mxu0 0.0
    %958 = vmatpush1.msra.mxu0 0.0
    %959 = vmatprep.subr.mxu0 0.0
    %960 = vmatpush1.msra.mxu0 0.0
    %961 = vmatprep.subr.mxu0 0.0
    %962 = vmatpush1.msra.mxu0 0.0
    %963 = vmatprep.subr.mxu0 0.0
    %964 = vmatpush1.msra.mxu0 0.0
    %965 = vmatprep.subr.mxu0 0.0
    %966 = vmatpush1.msra.mxu0 0.0
    %967 = vmatprep.subr.mxu0 0.0
    %968 = vmatpush1.msra.mxu0 0.0
    %969 = vmatprep.subr.mxu0 0.0
    %970 = vmatpush1.msra.mxu0 0.0
    %971 = vmatprep.subr.mxu0 0.0
    %972 = vmatpush1.msra.mxu0 0.0
    %973 = vmatprep.subr.mxu0 0.0
    %974 = vmatpush1.msra.mxu0 0.0
    %975 = vmatprep.subr.mxu0 0.0
    %976 = vmatpush1.msra.mxu0 0.0
    %977 = vmatprep.subr.mxu0 0.0
    %978 = vmatpush1.msra.mxu0 0.0
    %979 = vmatprep.subr.mxu0 0.0
    %980 = vmatpush1.msra.mxu0 0.0
    %981 = vmatprep.subr.mxu0 0.0
    %982 = vmatpush1.msra.mxu0 0.0
    %983 = vmatprep.subr.mxu0 0.0
    %984 = vmatpush1.msra.mxu0 0.0
    %985 = vmatprep.subr.mxu0 0.0
    %986 = vmatpush1.msra.mxu0 0.0
    %987 = vmatprep.subr.mxu0 0.0
    %988 = vmatpush1.msra.mxu0 0.0
    %989 = vmatprep.subr.mxu0 0.0
    %990 = vmatpush1.msra.mxu0 0.0
    %991 = vmatprep.mubr.f32.mxu0 0.0
    %992 = vmatmul.mubr.f32.gmra.mrb[0].mxu0 %v560
    %v993 = vpop.f32.mrb[0].mxu0
    %v994 = vadd.f32 0.0, %v993
    %v995 = vpop.f32.mrb[0].mxu0
    %996 = vmatprep.mubr.f32.mxu0 0.0
    %997 = vmatmul.mubr.f32.gmra.mrb[0].mxu0 %v563
    %v998 = vpop.f32.mrb[0].mxu0
    %v999 = vadd.f32 0.0, %v998
    %v1000 = vpop.f32.mrb[0].mxu0
    %1001 = vdwg.mxu0
    %1002 = vmatprep.subr.mxu0 0.0
    %1003 = vmatpush1.msra.mxu0 %v918
    %1004 = vmatprep.subr.mxu0 0.0
    %1005 = vmatpush1.msra.mxu0 %v919
    %1006 = vmatprep.subr.mxu0 0.0
    %1007 = vmatpush1.msra.mxu0 %v920
    %1008 = vmatprep.subr.mxu0 0.0
    %1009 = vmatpush1.msra.mxu0 %v921
    %1010 = vmatprep.subr.mxu0 0.0
    %1011 = vmatpush1.msra.mxu0 0.0
    %1012 = vmatprep.subr.mxu0 0.0
    %1013 = vmatpush1.msra.mxu0 0.0
    %1014 = vmatprep.subr.mxu0 0.0
    %1015 = vmatpush1.msra.mxu0 0.0
    %1016 = vmatprep.subr.mxu0 0.0
    %1017 = vmatpush1.msra.mxu0 0.0
    %1018 = vmatprep.subr.mxu0 0.0
    %1019 = vmatpush1.msra.mxu0 0.0
    %1020 = vmatprep.subr.mxu0 0.0
    %1021 = vmatpush1.msra.mxu0 0.0
    %1022 = vmatprep.subr.mxu0 0.0
    %1023 = vmatpush1.msra.mxu0 0.0
    %1024 = vmatprep.subr.mxu0 0.0
    %1025 = vmatpush1.msra.mxu0 0.0
    %1026 = vmatprep.subr.mxu0 0.0
    %1027 = vmatpush1.msra.mxu0 0.0
    %1028 = vmatprep.subr.mxu0 0.0
    %1029 = vmatpush1.msra.mxu0 0.0
    %1030 = vmatprep.subr.mxu0 0.0
    %1031 = vmatpush1.msra.mxu0 0.0
    %1032 = vmatprep.subr.mxu0 0.0
    %1033 = vmatpush1.msra.mxu0 0.0
    %1034 = vmatprep.subr.mxu0 0.0
    %1035 = vmatpush1.msra.mxu0 0.0
    %1036 = vmatprep.subr.mxu0 0.0
    %1037 = vmatpush1.msra.mxu0 0.0
    %1038 = vmatprep.subr.mxu0 0.0
    %1039 = vmatpush1.msra.mxu0 0.0
    %1040 = vmatprep.subr.mxu0 0.0
    %1041 = vmatpush1.msra.mxu0 0.0
    %1042 = vmatprep.subr.mxu0 0.0
    %1043 = vmatpush1.msra.mxu0 0.0
    %1044 = vmatprep.subr.mxu0 0.0
    %1045 = vmatpush1.msra.mxu0 0.0
    %1046 = vmatprep.subr.mxu0 0.0
    %1047 = vmatpush1.msra.mxu0 0.0
    %1048 = vmatprep.subr.mxu0 0.0
    %1049 = vmatpush1.msra.mxu0 0.0
    %1050 = vmatprep.subr.mxu0 0.0
    %1051 = vmatpush1.msra.mxu0 0.0
    %1052 = vmatprep.subr.mxu0 0.0
    %1053 = vmatpush1.msra.mxu0 0.0
    %1054 = vmatprep.subr.mxu0 0.0
    %1055 = vmatpush1.msra.mxu0 0.0
    %1056 = vmatprep.subr.mxu0 0.0
    %1057 = vmatpush1.msra.mxu0 0.0
    %1058 = vmatprep.subr.mxu0 0.0
    %1059 = vmatpush1.msra.mxu0 0.0
    %1060 = vmatprep.subr.mxu0 0.0
    %1061 = vmatpush1.msra.mxu0 0.0
    %1062 = vmatprep.subr.mxu0 0.0
    %1063 = vmatpush1.msra.mxu0 0.0
    %1064 = vmatprep.subr.mxu0 0.0
    %1065 = vmatpush1.msra.mxu0 0.0
    %1066 = vmatprep.mubr.f32.mxu0 0.0
    %1067 = vmatmul.mubr.f32.gmra.mrb[0].mxu0 %v641
    %v1068 = vpop.f32.mrb[0].mxu0
    %v1069 = vadd.f32 %v994, %v1068
    %v1070 = vpop.f32.mrb[0].mxu0
    %1071 = vmatprep.mubr.f32.mxu0 0.0
    %1072 = vmatmul.mubr.f32.gmra.mrb[0].mxu0 %v644
    %v1073 = vpop.f32.mrb[0].mxu0
    %v1074 = vadd.f32 %v999, %v1073
    %v1075 = vpop.f32.mrb[0].mxu0
    %1076 = vdwg.mxu0
    %s1077 = scalar_lea.vmem [#allocation8], 160
    %v1078 = vld [vmem:[%s1077] sm:$0xff]
    %v1079 = vld [vmem:[%s1077 + $0x8] sm:$0xff]
    %v1080 = vld [vmem:[%s1077 + $0x10] sm:$0xff]
    %v1081 = vld [vmem:[%s1077 + $0x18] sm:$0xff]
    %1082 = vmatprep.subr.mxu0 0.0
    %1083 = vmatpush1.msra.mxu0 %v1078
    %1084 = vmatprep.subr.mxu0 0.0
    %1085 = vmatpush1.msra.mxu0 %v1079
    %1086 = vmatprep.subr.mxu0 0.0
    %1087 = vmatpush1.msra.mxu0 %v1080
    %1088 = vmatprep.subr.mxu0 0.0
    %1089 = vmatpush1.msra.mxu0 %v1081
    %1090 = vmatprep.subr.mxu0 0.0
    %1091 = vmatpush1.msra.mxu0 0.0
    %1092 = vmatprep.subr.mxu0 0.0
    %1093 = vmatpush1.msra.mxu0 0.0
    %1094 = vmatprep.subr.mxu0 0.0
    %1095 = vmatpush1.msra.mxu0 0.0
    %1096 = vmatprep.subr.mxu0 0.0
    %1097 = vmatpush1.msra.mxu0 0.0
    %1098 = vmatprep.subr.mxu0 0.0
    %1099 = vmatpush1.msra.mxu0 0.0
    %1100 = vmatprep.subr.mxu0 0.0
    %1101 = vmatpush1.msra.mxu0 0.0
    %1102 = vmatprep.subr.mxu0 0.0
    %1103 = vmatpush1.msra.mxu0 0.0
    %1104 = vmatprep.subr.mxu0 0.0
    %1105 = vmatpush1.msra.mxu0 0.0
    %1106 = vmatprep.subr.mxu0 0.0
    %1107 = vmatpush1.msra.mxu0 0.0
    %1108 = vmatprep.subr.mxu0 0.0
    %1109 = vmatpush1.msra.mxu0 0.0
    %1110 = vmatprep.subr.mxu0 0.0
    %1111 = vmatpush1.msra.mxu0 0.0
    %1112 = vmatprep.subr.mxu0 0.0
    %1113 = vmatpush1.msra.mxu0 0.0
    %1114 = vmatprep.subr.mxu0 0.0
    %1115 = vmatpush1.msra.mxu0 0.0
    %1116 = vmatprep.subr.mxu0 0.0
    %1117 = vmatpush1.msra.mxu0 0.0
    %1118 = vmatprep.subr.mxu0 0.0
    %1119 = vmatpush1.msra.mxu0 0.0
    %1120 = vmatprep.subr.mxu0 0.0
    %1121 = vmatpush1.msra.mxu0 0.0
    %1122 = vmatprep.subr.mxu0 0.0
    %1123 = vmatpush1.msra.mxu0 0.0
    %1124 = vmatprep.subr.mxu0 0.0
    %1125 = vmatpush1.msra.mxu0 0.0
    %1126 = vmatprep.subr.mxu0 0.0
    %1127 = vmatpush1.msra.mxu0 0.0
    %1128 = vmatprep.subr.mxu0 0.0
    %1129 = vmatpush1.msra.mxu0 0.0
    %1130 = vmatprep.subr.mxu0 0.0
    %1131 = vmatpush1.msra.mxu0 0.0
    %1132 = vmatprep.subr.mxu0 0.0
    %1133 = vmatpush1.msra.mxu0 0.0
    %1134 = vmatprep.subr.mxu0 0.0
    %1135 = vmatpush1.msra.mxu0 0.0
    %1136 = vmatprep.subr.mxu0 0.0
    %1137 = vmatpush1.msra.mxu0 0.0
    %1138 = vmatprep.subr.mxu0 0.0
    %1139 = vmatpush1.msra.mxu0 0.0
    %1140 = vmatprep.subr.mxu0 0.0
    %1141 = vmatpush1.msra.mxu0 0.0
    %1142 = vmatprep.subr.mxu0 0.0
    %1143 = vmatpush1.msra.mxu0 0.0
    %1144 = vmatprep.subr.mxu0 0.0
    %1145 = vmatpush1.msra.mxu0 0.0
    %1146 = vmatprep.mubr.f32.mxu0 0.0
    %1147 = vmatmul.mubr.f32.gmra.mrb[0].mxu0 %v727
    %v1148 = vpop.f32.mrb[0].mxu0
    %v1149 = vadd.f32 0.0, %v1148
    %v1150 = vpop.f32.mrb[0].mxu0
    %1151 = vmatprep.mubr.f32.mxu0 0.0
    %1152 = vmatmul.mubr.f32.gmra.mrb[0].mxu0 %v730
    %v1153 = vpop.f32.mrb[0].mxu0
    %v1154 = vadd.f32 0.0, %v1153
    %v1155 = vpop.f32.mrb[0].mxu0
    %1156 = vdwg.mxu0
    %v1157 = vadd.f32 %v1069, %v1149
    %v1158 = vadd.f32 %v1074, %v1154
    %s1159 = scalar_lea.vmem [#allocation10], 32
    %v1160 = vld [vmem:[%s1159] sm:$0xff]
    %v1161 = vld [vmem:[%s1159 + $0x8] sm:$0xff]
    %v1162 = vld [vmem:[%s1159 + $0x10] sm:$0xff]
    %v1163 = vld [vmem:[%s1159 + $0x18] sm:$0xff]
    %1164 = vmatprep.subr.mxu0 0.0
    %1165 = vmatpush1.msra.mxu0 %v1160
    %1166 = vmatprep.subr.mxu0 0.0
    %1167 = vmatpush1.msra.mxu0 %v1161
    %1168 = vmatprep.subr.mxu0 0.0
    %1169 = vmatpush1.msra.mxu0 %v1162
    %1170 = vmatprep.subr.mxu0 0.0
    %1171 = vmatpush1.msra.mxu0 %v1163
    %1172 = vmatprep.subr.mxu0 0.0
    %1173 = vmatpush1.msra.mxu0 0.0
    %1174 = vmatprep.subr.mxu0 0.0
    %1175 = vmatpush1.msra.mxu0 0.0
    %1176 = vmatprep.subr.mxu0 0.0
    %1177 = vmatpush1.msra.mxu0 0.0
    %1178 = vmatprep.subr.mxu0 0.0
    %1179 = vmatpush1.msra.mxu0 0.0
    %1180 = vmatprep.subr.mxu0 0.0
    %1181 = vmatpush1.msra.mxu0 0.0
    %1182 = vmatprep.subr.mxu0 0.0
    %1183 = vmatpush1.msra.mxu0 0.0
    %1184 = vmatprep.subr.mxu0 0.0
    %1185 = vmatpush1.msra.mxu0 0.0
    %1186 = vmatprep.subr.mxu0 0.0
    %1187 = vmatpush1.msra.mxu0 0.0
    %1188 = vmatprep.subr.mxu0 0.0
    %1189 = vmatpush1.msra.mxu0 0.0
    %1190 = vmatprep.subr.mxu0 0.0
    %1191 = vmatpush1.msra.mxu0 0.0
    %1192 = vmatprep.subr.mxu0 0.0
    %1193 = vmatpush1.msra.mxu0 0.0
    %1194 = vmatprep.subr.mxu0 0.0
    %1195 = vmatpush1.msra.mxu0 0.0
    %1196 = vmatprep.subr.mxu0 0.0
    %1197 = vmatpush1.msra.mxu0 0.0
    %1198 = vmatprep.subr.mxu0 0.0
    %1199 = vmatpush1.msra.mxu0 0.0
    %1200 = vmatprep.subr.mxu0 0.0
    %1201 = vmatpush1.msra.mxu0 0.0
    %1202 = vmatprep.subr.mxu0 0.0
    %1203 = vmatpush1.msra.mxu0 0.0
    %1204 = vmatprep.subr.mxu0 0.0
    %1205 = vmatpush1.msra.mxu0 0.0
    %1206 = vmatprep.subr.mxu0 0.0
    %1207 = vmatpush1.msra.mxu0 0.0
    %1208 = vmatprep.subr.mxu0 0.0
    %1209 = vmatpush1.msra.mxu0 0.0
    %1210 = vmatprep.subr.mxu0 0.0
    %1211 = vmatpush1.msra.mxu0 0.0
    %1212 = vmatprep.subr.mxu0 0.0
    %1213 = vmatpush1.msra.mxu0 0.0
    %1214 = vmatprep.subr.mxu0 0.0
    %1215 = vmatpush1.msra.mxu0 0.0
    %1216 = vmatprep.subr.mxu0 0.0
    %1217 = vmatpush1.msra.mxu0 0.0
    %1218 = vmatprep.subr.mxu0 0.0
    %1219 = vmatpush1.msra.mxu0 0.0
    %1220 = vmatprep.subr.mxu0 0.0
    %1221 = vmatpush1.msra.mxu0 0.0
    %1222 = vmatprep.subr.mxu0 0.0
    %1223 = vmatpush1.msra.mxu0 0.0
    %1224 = vmatprep.subr.mxu0 0.0
    %1225 = vmatpush1.msra.mxu0 0.0
    %1226 = vmatprep.subr.mxu0 0.0
    %1227 = vmatpush1.msra.mxu0 0.0
    %1228 = vmatprep.mubr.f32.mxu0 0.0
    %1229 = vmatmul.mubr.f32.gmra.mrb[0].mxu0 %v814
    %v1230 = vpop.f32.mrb[0].mxu0
    %v1231 = vadd.f32 0.0, %v1230
    %v1232 = vpop.f32.mrb[0].mxu0
    %1233 = vmatprep.mubr.f32.mxu0 0.0
    %1234 = vmatmul.mubr.f32.gmra.mrb[0].mxu0 %v817
    %v1235 = vpop.f32.mrb[0].mxu0
    %v1236 = vadd.f32 0.0, %v1235
    %v1237 = vpop.f32.mrb[0].mxu0
    %1238 = vdwg.mxu0
    %v1239 = vadd.f32 %v1157, %v1231
    %v1240 = vadd.f32 %v1158, %v1236
    %s1241 = scalar_lea.vmem %s5, 1
    %v1242 = vld [vmem:[%s1241] sm:$0x1]
    %v1244 = vlaneseq
    %v1245 = vshrl.u32 %v1244, 7
    %v1246 = vsub.s32 0, %v1245
    %v1247 = vrot.slane %v1242, %v1246
    %v1249 = vadd.f32 %v1239, %v1247
    %v1250 = vadd.f32 %v1240, %v1247
    %v1251 = vxor.u32 %v1249, 2147483648
    %v1252 = vxor.u32 %v1250, 2147483648
    %v1253 = vmul.f32 %v1251, 1.442695
    %v1254 = vpow.pop %v1253
    %v1255 = vmul.f32 %v1252, 1.442695
    %v1256 = vpow.pop %v1255
    %v1257 = vadd.f32 %v1254, 1.0
    %v1258 = vadd.f32 %v1256, 1.0
    %v1259 = vrcp.pop %v1257
    %v1260 = vmul.f32 1.0, %v1259
    %v1261 = vrcp.pop %v1258
    %v1262 = vmul.f32 1.0, %v1261
    %s1263 = scalar_lea.vmem [#allocation8], 192
    %v1264 = vld [vmem:[%s1263] sm:$0xff]
    %v1265 = vld [vmem:[%s1263 + $0x8] sm:$0xff]
    %v1266 = vld [vmem:[%s1263 + $0x10] sm:$0xff]
    %v1267 = vld [vmem:[%s1263 + $0x18] sm:$0xff]
    %s1268 = scalar_lea.vmem [#allocation8], 224
    %v1269 = vld [vmem:[%s1268] sm:$0xff]
    %v1270 = vld [vmem:[%s1268 + $0x8] sm:$0xff]
    %v1271 = vld [vmem:[%s1268 + $0x10] sm:$0xff]
    %v1272 = vld [vmem:[%s1268 + $0x18] sm:$0xff]
    %1273 = vmatprep.subr.mxu0 0.0
    %1274 = vmatpush1.msra.mxu0 %v1269
    %1275 = vmatprep.subr.mxu0 0.0
    %1276 = vmatpush1.msra.mxu0 %v1270
    %1277 = vmatprep.subr.mxu0 0.0
    %1278 = vmatpush1.msra.mxu0 %v1271
    %1279 = vmatprep.subr.mxu0 0.0
    %1280 = vmatpush1.msra.mxu0 %v1272
    %1281 = vmatprep.subr.mxu0 0.0
    %1282 = vmatpush1.msra.mxu0 0.0
    %1283 = vmatprep.subr.mxu0 0.0
    %1284 = vmatpush1.msra.mxu0 0.0
    %1285 = vmatprep.subr.mxu0 0.0
    %1286 = vmatpush1.msra.mxu0 0.0
    %1287 = vmatprep.subr.mxu0 0.0
    %1288 = vmatpush1.msra.mxu0 0.0
    %1289 = vmatprep.subr.mxu0 0.0
    %1290 = vmatpush1.msra.mxu0 0.0
    %1291 = vmatprep.subr.mxu0 0.0
    %1292 = vmatpush1.msra.mxu0 0.0
    %1293 = vmatprep.subr.mxu0 0.0
    %1294 = vmatpush1.msra.mxu0 0.0
    %1295 = vmatprep.subr.mxu0 0.0
    %1296 = vmatpush1.msra.mxu0 0.0
    %1297 = vmatprep.subr.mxu0 0.0
    %1298 = vmatpush1.msra.mxu0 0.0
    %1299 = vmatprep.subr.mxu0 0.0
    %1300 = vmatpush1.msra.mxu0 0.0
    %1301 = vmatprep.subr.mxu0 0.0
    %1302 = vmatpush1.msra.mxu0 0.0
    %1303 = vmatprep.subr.mxu0 0.0
    %1304 = vmatpush1.msra.mxu0 0.0
    %1305 = vmatprep.subr.mxu0 0.0
    %1306 = vmatpush1.msra.mxu0 0.0
    %1307 = vmatprep.subr.mxu0 0.0
    %1308 = vmatpush1.msra.mxu0 0.0
    %1309 = vmatprep.subr.mxu0 0.0
    %1310 = vmatpush1.msra.mxu0 0.0
    %1311 = vmatprep.subr.mxu0 0.0
    %1312 = vmatpush1.msra.mxu0 0.0
    %1313 = vmatprep.subr.mxu0 0.0
    %1314 = vmatpush1.msra.mxu0 0.0
    %1315 = vmatprep.subr.mxu0 0.0
    %1316 = vmatpush1.msra.mxu0 0.0
    %1317 = vmatprep.subr.mxu0 0.0
    %1318 = vmatpush1.msra.mxu0 0.0
    %1319 = vmatprep.subr.mxu0 0.0
    %1320 = vmatpush1.msra.mxu0 0.0
    %1321 = vmatprep.subr.mxu0 0.0
    %1322 = vmatpush1.msra.mxu0 0.0
    %1323 = vmatprep.subr.mxu0 0.0
    %1324 = vmatpush1.msra.mxu0 0.0
    %1325 = vmatprep.subr.mxu0 0.0
    %1326 = vmatpush1.msra.mxu0 0.0
    %1327 = vmatprep.subr.mxu0 0.0
    %1328 = vmatpush1.msra.mxu0 0.0
    %1329 = vmatprep.subr.mxu0 0.0
    %1330 = vmatpush1.msra.mxu0 0.0
    %1331 = vmatprep.subr.mxu0 0.0
    %1332 = vmatpush1.msra.mxu0 0.0
    %1333 = vmatprep.subr.mxu0 0.0
    %1334 = vmatpush1.msra.mxu0 0.0
    %1335 = vmatprep.subr.mxu0 0.0
    %1336 = vmatpush1.msra.mxu0 0.0
    %1337 = vmatprep.mubr.f32.mxu0 0.0
    %1338 = vmatmul.mubr.f32.gmra.mrb[0].mxu0 %v560
    %v1339 = vpop.f32.mrb[0].mxu0
    %v1340 = vadd.f32 0.0, %v1339
    %v1341 = vpop.f32.mrb[0].mxu0
    %1342 = vmatprep.mubr.f32.mxu0 0.0
    %1343 = vmatmul.mubr.f32.gmra.mrb[0].mxu0 %v563
    %v1344 = vpop.f32.mrb[0].mxu0
    %v1345 = vadd.f32 0.0, %v1344
    %v1346 = vpop.f32.mrb[0].mxu0
    %1347 = vdwg.mxu0
    %1348 = vmatprep.subr.mxu0 0.0
    %1349 = vmatpush1.msra.mxu0 %v1264
    %1350 = vmatprep.subr.mxu0 0.0
    %1351 = vmatpush1.msra.mxu0 %v1265
    %1352 = vmatprep.subr.mxu0 0.0
    %1353 = vmatpush1.msra.mxu0 %v1266
    %1354 = vmatprep.subr.mxu0 0.0
    %1355 = vmatpush1.msra.mxu0 %v1267
    %1356 = vmatprep.subr.mxu0 0.0
    %1357 = vmatpush1.msra.mxu0 0.0
    %1358 = vmatprep.subr.mxu0 0.0
    %1359 = vmatpush1.msra.mxu0 0.0
    %1360 = vmatprep.subr.mxu0 0.0
    %1361 = vmatpush1.msra.mxu0 0.0
    %1362 = vmatprep.subr.mxu0 0.0
    %1363 = vmatpush1.msra.mxu0 0.0
    %1364 = vmatprep.subr.mxu0 0.0
    %1365 = vmatpush1.msra.mxu0 0.0
    %1366 = vmatprep.subr.mxu0 0.0
    %1367 = vmatpush1.msra.mxu0 0.0
    %1368 = vmatprep.subr.mxu0 0.0
    %1369 = vmatpush1.msra.mxu0 0.0
    %1370 = vmatprep.subr.mxu0 0.0
    %1371 = vmatpush1.msra.mxu0 0.0
    %1372 = vmatprep.subr.mxu0 0.0
    %1373 = vmatpush1.msra.mxu0 0.0
    %1374 = vmatprep.subr.mxu0 0.0
    %1375 = vmatpush1.msra.mxu0 0.0
    %1376 = vmatprep.subr.mxu0 0.0
    %1377 = vmatpush1.msra.mxu0 0.0
    %1378 = vmatprep.subr.mxu0 0.0
    %1379 = vmatpush1.msra.mxu0 0.0
    %1380 = vmatprep.subr.mxu0 0.0
    %1381 = vmatpush1.msra.mxu0 0.0
    %1382 = vmatprep.subr.mxu0 0.0
    %1383 = vmatpush1.msra.mxu0 0.0
    %1384 = vmatprep.subr.mxu0 0.0
    %1385 = vmatpush1.msra.mxu0 0.0
    %1386 = vmatprep.subr.mxu0 0.0
    %1387 = vmatpush1.msra.mxu0 0.0
    %1388 = vmatprep.subr.mxu0 0.0
    %1389 = vmatpush1.msra.mxu0 0.0
    %1390 = vmatprep.subr.mxu0 0.0
    %1391 = vmatpush1.msra.mxu0 0.0
    %1392 = vmatprep.subr.mxu0 0.0
    %1393 = vmatpush1.msra.mxu0 0.0
    %1394 = vmatprep.subr.mxu0 0.0
    %1395 = vmatpush1.msra.mxu0 0.0
    %1396 = vmatprep.subr.mxu0 0.0
    %1397 = vmatpush1.msra.mxu0 0.0
    %1398 = vmatprep.subr.mxu0 0.0
    %1399 = vmatpush1.msra.mxu0 0.0
    %1400 = vmatprep.subr.mxu0 0.0
    %1401 = vmatpush1.msra.mxu0 0.0
    %1402 = vmatprep.subr.mxu0 0.0
    %1403 = vmatpush1.msra.mxu0 0.0
    %1404 = vmatprep.subr.mxu0 0.0
    %1405 = vmatpush1.msra.mxu0 0.0
    %1406 = vmatprep.subr.mxu0 0.0
    %1407 = vmatpush1.msra.mxu0 0.0
    %1408 = vmatprep.subr.mxu0 0.0
    %1409 = vmatpush1.msra.mxu0 0.0
    %1410 = vmatprep.subr.mxu0 0.0
    %1411 = vmatpush1.msra.mxu0 0.0
    %1412 = vmatprep.mubr.f32.mxu0 0.0
    %1413 = vmatmul.mubr.f32.gmra.mrb[0].mxu0 %v641
    %v1414 = vpop.f32.mrb[0].mxu0
    %v1415 = vadd.f32 %v1340, %v1414
    %v1416 = vpop.f32.mrb[0].mxu0
    %1417 = vmatprep.mubr.f32.mxu0 0.0
    %1418 = vmatmul.mubr.f32.gmra.mrb[0].mxu0 %v644
    %v1419 = vpop.f32.mrb[0].mxu0
    %v1420 = vadd.f32 %v1345, %v1419
    %v1421 = vpop.f32.mrb[0].mxu0
    %1422 = vdwg.mxu0
    %s1423 = scalar_lea.vmem [#allocation8], 256
    %v1424 = vld [vmem:[%s1423] sm:$0xff]
    %v1425 = vld [vmem:[%s1423 + $0x8] sm:$0xff]
    %v1426 = vld [vmem:[%s1423 + $0x10] sm:$0xff]
    %v1427 = vld [vmem:[%s1423 + $0x18] sm:$0xff]
    %1428 = vmatprep.subr.mxu0 0.0
    %1429 = vmatpush1.msra.mxu0 %v1424
    %1430 = vmatprep.subr.mxu0 0.0
    %1431 = vmatpush1.msra.mxu0 %v1425
    %1432 = vmatprep.subr.mxu0 0.0
    %1433 = vmatpush1.msra.mxu0 %v1426
    %1434 = vmatprep.subr.mxu0 0.0
    %1435 = vmatpush1.msra.mxu0 %v1427
    %1436 = vmatprep.subr.mxu0 0.0
    %1437 = vmatpush1.msra.mxu0 0.0
    %1438 = vmatprep.subr.mxu0 0.0
    %1439 = vmatpush1.msra.mxu0 0.0
    %1440 = vmatprep.subr.mxu0 0.0
    %1441 = vmatpush1.msra.mxu0 0.0
    %1442 = vmatprep.subr.mxu0 0.0
    %1443 = vmatpush1.msra.mxu0 0.0
    %1444 = vmatprep.subr.mxu0 0.0
    %1445 = vmatpush1.msra.mxu0 0.0
    %1446 = vmatprep.subr.mxu0 0.0
    %1447 = vmatpush1.msra.mxu0 0.0
    %1448 = vmatprep.subr.mxu0 0.0
    %1449 = vmatpush1.msra.mxu0 0.0
    %1450 = vmatprep.subr.mxu0 0.0
    %1451 = vmatpush1.msra.mxu0 0.0
    %1452 = vmatprep.subr.mxu0 0.0
    %1453 = vmatpush1.msra.mxu0 0.0
    %1454 = vmatprep.subr.mxu0 0.0
    %1455 = vmatpush1.msra.mxu0 0.0
    %1456 = vmatprep.subr.mxu0 0.0
    %1457 = vmatpush1.msra.mxu0 0.0
    %1458 = vmatprep.subr.mxu0 0.0
    %1459 = vmatpush1.msra.mxu0 0.0
    %1460 = vmatprep.subr.mxu0 0.0
    %1461 = vmatpush1.msra.mxu0 0.0
    %1462 = vmatprep.subr.mxu0 0.0
    %1463 = vmatpush1.msra.mxu0 0.0
    %1464 = vmatprep.subr.mxu0 0.0
    %1465 = vmatpush1.msra.mxu0 0.0
    %1466 = vmatprep.subr.mxu0 0.0
    %1467 = vmatpush1.msra.mxu0 0.0
    %1468 = vmatprep.subr.mxu0 0.0
    %1469 = vmatpush1.msra.mxu0 0.0
    %1470 = vmatprep.subr.mxu0 0.0
    %1471 = vmatpush1.msra.mxu0 0.0
    %1472 = vmatprep.subr.mxu0 0.0
    %1473 = vmatpush1.msra.mxu0 0.0
    %1474 = vmatprep.subr.mxu0 0.0
    %1475 = vmatpush1.msra.mxu0 0.0
    %1476 = vmatprep.subr.mxu0 0.0
    %1477 = vmatpush1.msra.mxu0 0.0
    %1478 = vmatprep.subr.mxu0 0.0
    %1479 = vmatpush1.msra.mxu0 0.0
    %1480 = vmatprep.subr.mxu0 0.0
    %1481 = vmatpush1.msra.mxu0 0.0
    %1482 = vmatprep.subr.mxu0 0.0
    %1483 = vmatpush1.msra.mxu0 0.0
    %1484 = vmatprep.subr.mxu0 0.0
    %1485 = vmatpush1.msra.mxu0 0.0
    %1486 = vmatprep.subr.mxu0 0.0
    %1487 = vmatpush1.msra.mxu0 0.0
    %1488 = vmatprep.subr.mxu0 0.0
    %1489 = vmatpush1.msra.mxu0 0.0
    %1490 = vmatprep.subr.mxu0 0.0
    %1491 = vmatpush1.msra.mxu0 0.0
    %1492 = vmatprep.mubr.f32.mxu0 0.0
    %1493 = vmatmul.mubr.f32.gmra.mrb[0].mxu0 %v727
    %v1494 = vpop.f32.mrb[0].mxu0
    %v1495 = vadd.f32 0.0, %v1494
    %v1496 = vpop.f32.mrb[0].mxu0
    %1497 = vmatprep.mubr.f32.mxu0 0.0
    %1498 = vmatmul.mubr.f32.gmra.mrb[0].mxu0 %v730
    %v1499 = vpop.f32.mrb[0].mxu0
    %v1500 = vadd.f32 0.0, %v1499
    %v1501 = vpop.f32.mrb[0].mxu0
    %1502 = vdwg.mxu0
    %v1503 = vadd.f32 %v1415, %v1495
    %v1504 = vadd.f32 %v1420, %v1500
    %s1505 = scalar_lea.vmem %s5, 2
    %v1506 = vld [vmem:[%s1505] sm:$0x1]
    %v1508 = vlaneseq
    %v1509 = vshrl.u32 %v1508, 7
    %v1510 = vsub.s32 0, %v1509
    %v1511 = vrot.slane %v1506, %v1510
    %v1513 = vadd.f32 %v1503, %v1511
    %v1514 = vadd.f32 %v1504, %v1511
    %s1515 = scalar_lea.vmem [#allocation10], 64
    %v1516 = vld [vmem:[%s1515] sm:$0xff]
    %v1517 = vld [vmem:[%s1515 + $0x8] sm:$0xff]
    %v1518 = vld [vmem:[%s1515 + $0x10] sm:$0xff]
    %v1519 = vld [vmem:[%s1515 + $0x18] sm:$0xff]
    %s1520 = scalar_lea.vmem %s5, 3
    %v1521 = vld [vmem:[%s1520] sm:$0x1]
    %v1523 = vlaneseq
    %v1524 = vshrl.u32 %v1523, 7
    %v1525 = vsub.s32 0, %v1524
    %v1526 = vrot.slane %v1521, %v1525
    %1528 = vmatprep.subr.mxu0 0.0
    %1529 = vmatpush1.msra.mxu0 %v1516
    %1530 = vmatprep.subr.mxu0 0.0
    %1531 = vmatpush1.msra.mxu0 %v1517
    %1532 = vmatprep.subr.mxu0 0.0
    %1533 = vmatpush1.msra.mxu0 %v1518
    %1534 = vmatprep.subr.mxu0 0.0
    %1535 = vmatpush1.msra.mxu0 %v1519
    %1536 = vmatprep.subr.mxu0 0.0
    %1537 = vmatpush1.msra.mxu0 0.0
    %1538 = vmatprep.subr.mxu0 0.0
    %1539 = vmatpush1.msra.mxu0 0.0
    %1540 = vmatprep.subr.mxu0 0.0
    %1541 = vmatpush1.msra.mxu0 0.0
    %1542 = vmatprep.subr.mxu0 0.0
    %1543 = vmatpush1.msra.mxu0 0.0
    %1544 = vmatprep.subr.mxu0 0.0
    %1545 = vmatpush1.msra.mxu0 0.0
    %1546 = vmatprep.subr.mxu0 0.0
    %1547 = vmatpush1.msra.mxu0 0.0
    %1548 = vmatprep.subr.mxu0 0.0
    %1549 = vmatpush1.msra.mxu0 0.0
    %1550 = vmatprep.subr.mxu0 0.0
    %1551 = vmatpush1.msra.mxu0 0.0
    %1552 = vmatprep.subr.mxu0 0.0
    %1553 = vmatpush1.msra.mxu0 0.0
    %1554 = vmatprep.subr.mxu0 0.0
    %1555 = vmatpush1.msra.mxu0 0.0
    %1556 = vmatprep.subr.mxu0 0.0
    %1557 = vmatpush1.msra.mxu0 0.0
    %1558 = vmatprep.subr.mxu0 0.0
    %1559 = vmatpush1.msra.mxu0 0.0
    %1560 = vmatprep.subr.mxu0 0.0
    %1561 = vmatpush1.msra.mxu0 0.0
    %1562 = vmatprep.subr.mxu0 0.0
    %1563 = vmatpush1.msra.mxu0 0.0
    %1564 = vmatprep.subr.mxu0 0.0
    %1565 = vmatpush1.msra.mxu0 0.0
    %1566 = vmatprep.subr.mxu0 0.0
    %1567 = vmatpush1.msra.mxu0 0.0
    %1568 = vmatprep.subr.mxu0 0.0
    %1569 = vmatpush1.msra.mxu0 0.0
    %1570 = vmatprep.subr.mxu0 0.0
    %1571 = vmatpush1.msra.mxu0 0.0
    %1572 = vmatprep.subr.mxu0 0.0
    %1573 = vmatpush1.msra.mxu0 0.0
    %1574 = vmatprep.subr.mxu0 0.0
    %1575 = vmatpush1.msra.mxu0 0.0
    %1576 = vmatprep.subr.mxu0 0.0
    %1577 = vmatpush1.msra.mxu0 0.0
    %1578 = vmatprep.subr.mxu0 0.0
    %1579 = vmatpush1.msra.mxu0 0.0
    %1580 = vmatprep.subr.mxu0 0.0
    %1581 = vmatpush1.msra.mxu0 0.0
    %1582 = vmatprep.subr.mxu0 0.0
    %1583 = vmatpush1.msra.mxu0 0.0
    %1584 = vmatprep.subr.mxu0 0.0
    %1585 = vmatpush1.msra.mxu0 0.0
    %1586 = vmatprep.subr.mxu0 0.0
    %1587 = vmatpush1.msra.mxu0 0.0
    %1588 = vmatprep.subr.mxu0 0.0
    %1589 = vmatpush1.msra.mxu0 0.0
    %1590 = vmatprep.subr.mxu0 0.0
    %1591 = vmatpush1.msra.mxu0 0.0
    %1592 = vmatprep.mubr.f32.mxu0 0.0
    %1593 = vmatmul.mubr.f32.gmra.mrb[0].mxu0 %v814
    %v1594 = vpop.f32.mrb[0].mxu0
    %v1595 = vadd.f32 %v1526, %v1594
    %v1596 = vpop.f32.mrb[0].mxu0
    %1597 = vmatprep.mubr.f32.mxu0 0.0
    %1598 = vmatmul.mubr.f32.gmra.mrb[0].mxu0 %v817
    %v1599 = vpop.f32.mrb[0].mxu0
    %v1600 = vadd.f32 %v1526, %v1599
    %v1601 = vpop.f32.mrb[0].mxu0
    %1602 = vdwg.mxu0
    %v1603 = vmul.f32 %v914, %v1595
    %v1604 = vmul.f32 %v916, %v1600
    %v1605 = vadd.f32 %v1513, %v1603
    %v1606 = vadd.f32 %v1514, %v1604
    %v1607 = vtanh.pop %v1605
    %v1608 = vtanh.pop %v1606
    %v1609 = vsub.f32 1.0, %v1260
    %v1610 = vsub.f32 1.0, %v1262
    %v1611 = vmul.f32 %v1609, %v1607
    %v1612 = vmul.f32 %v1610, %v1608
    %v1613 = vmul.f32 %v1260, %v92
    %v1614 = vmul.f32 %v1262, %v93
    %v1615 = vadd.f32 %v1611, %v1613
    %v1616 = vadd.f32 %v1612, %v1614
    %1617 = vst.msk [vmem:[#allocation11] sm:$0xff] %vm558, %v1615
    %1618 = vst.msk [vmem:[#allocation11 + $0x8] sm:$0xff] %vm558, %v1616
    // Predicated region
    $region46: #{tpu_custom_call.1} parent=1 // pred_check
      _
    $region47: #{tpu_custom_call.1} parent=1 // pred_check_branch
      %1620 = sbr.rel (0) target = $region49
    $region48: #{tpu_custom_call.1} parent=1 // pred_region
      %s1622 = ssub.s32 256, 256
      %1623 = vsyncadd [#allocation4], %s1622
      %s1624 = sshll.u32 [#allocation11], 4
      %s1625 = int_to_ptr.vmem [resolvable:$true] %s1624
      %1630 = dma.vmem_to_hbm [thread:$0]  %s1625, 256, %s6, [#allocation4], 128, 128, 8
    $region49: #{tpu_custom_call.1} parent=1 // pred_fallthru
      _
    // Predicated region
    $region50: #{tpu_custom_call.1} parent=1 // pred_check
      _
    $region51: #{tpu_custom_call.1} parent=1 // pred_check_branch
      %1632 = sbr.rel (0) target = $region53
    $region52: #{tpu_custom_call.1} parent=1 // pred_region
      %1633 = dma.done [#allocation4], 256
    $region53: #{tpu_custom_call.1} parent=1 // pred_fallthru
      _
    %1634 = vsyncpa [#allocation3], 1
    %1635 = vsyncpa [#allocation6], 1
    %1636 = vsyncpa [#allocation9], 1
    %1637 = vsyncpa [#allocation4], 1

</llo_original>
